<compile_context>
chip_gen: v7x
topology: tpu7x:2x2x1
jax: 0.10.0
libtpu: 0.0.40
codegen_flags: <defaults>
</compile_context>

<pallas_src>
import jax
import jax.numpy as jnp
from jax.experimental import pallas as pl
from jax.experimental.pallas import tpu as pltpu

EMBED_DIM = 768
NUM_CLASSES = 2
DROPOUT_P = 0.0          # cfg.dropout default -> identity at inference
LANE = 128               # lane-dense padded logits width (>= NUM_CLASSES)
VOCAB = 100


def _round_up(x, m):
    return ((x + m - 1) // m) * m


def _fused_kernel(emb_ref, mask_ref, pw_ref, hw_ref, hb_ref, o_ref):
    """Masked-mean pool + pooler proj (768x768) + tanh + dropout(p=0) + head.

    emb_ref  : [tb, S, D] bf16  token features (stand-in backbone output)
    mask_ref : [tb, S, 1] f32   attention mask
    pw_ref   : [D, D]     bf16  pooler projection weight (resident across steps)
    hw_ref   : [D, LANE]  bf16  head weight, zero-padded from [D, C] (resident)
    hb_ref   : [1, LANE]  f32   head bias, zero-padded (resident)
    o_ref    : [tb, LANE] f32   lane-dense logits (columns >= C are zero padding)
    """
    m = mask_ref[...]                                     # [tb, S, 1] f32
    e = emb_ref[...].astype(jnp.float32)                  # [tb, S, D] f32
    ssum = jnp.sum(e * m, axis=1)                         # [tb, D]
    cnt = jnp.maximum(jnp.sum(m, axis=1), 1.0)            # [tb, 1]
    pooled = ssum / cnt                                   # masked mean, f32
    # TODO(synk): cfg.dropout > 0 (training mode) would need pltpu.prng_seed /
    # prng_random_bits masking with per-tile seeds; default p=0.0 is identity.
    x = pooled.astype(jnp.bfloat16)
    h = jnp.tanh(jnp.dot(x, pw_ref[...], preferred_element_type=jnp.float32))
    logits = jnp.dot(h.astype(jnp.bfloat16), hw_ref[...],
                     preferred_element_type=jnp.float32)
    o_ref[...] = (logits + hb_ref[...]).astype(o_ref.dtype)


def _pick_tb(B, S, max_tb=256, emb_block_budget=2 << 20):
    """Batch tile: multiple of 8, >=2 grid steps when B>=16 (v7x dual-TC),
    and the bf16 emb tile kept within a small per-buffer VMEM budget."""
    if B >= 16:
        tb = min(max_tb, _round_up(pl.cdiv(B, 2), 8))
    else:
        tb = 8
    rows_budget = max(8, (emb_block_budget // (S * EMBED_DIM * 2)) // 8 * 8)
    return max(8, min(tb, rows_budget))


def fused_pool_and_classify(emb, mask, pool_w, head_w_pad, head_b_pad,
                            *, num_classes=NUM_CLASSES, max_tb=256):
    """emb [B,S,D] bf16, mask [B,S,1] f32 -> logits [B, num_classes] f32."""
    B, S, D = emb.shape
    assert D == EMBED_DIM
    assert head_w_pad.shape == (D, LANE) and head_b_pad.shape == (1, LANE)
    tb = _pick_tb(B, S, max_tb)

    out = pl.pallas_call(
        _fused_kernel,
        out_shape=jax.ShapeDtypeStruct((B, LANE), jnp.float32),
        grid_spec=pl.GridSpec(
            grid=(pl.cdiv(B, tb),),                            # ragged last block OK
            in_specs=[
                pl.BlockSpec((tb, S, D), lambda i: (i, 0, 0)),  # emb batch tile
                pl.BlockSpec((tb, S, 1), lambda i: (i, 0, 0)),  # mask batch tile
                pl.BlockSpec((D, D), lambda i: (0, 0)),         # pool_w (resident)
                pl.BlockSpec((D, LANE), lambda i: (0, 0)),      # head weight (resident)
                pl.BlockSpec((1, LANE), lambda i: (0, 0)),      # head bias (resident)
            ],
            out_specs=pl.BlockSpec((tb, LANE), lambda i: (i, 0)),
        ),
        compiler_params=pltpu.CompilerParams(
            dimension_semantics=("parallel",)),
    )(emb, mask, pool_w, head_w_pad, head_b_pad)
    return out[:, :num_classes]


def text_classification_forward(text, attention_mask, params, token_type_ids=None):
    """Mirrors TextClassificationModel.forward."""
    # TODO(synk): the checkpoint-loaded pretrained backbone (model_call_fn ->
    # 'pooler_output') has no Pallas equivalent; a frozen bf16 embedding table +
    # masked-mean stands in for the text encoder.  The masked-mean pooling, the
    # 768x768 pooler projection + tanh, dropout(p=0.0) and the classification
    # head all run inside the single fused Pallas kernel.
    # TODO(synk): the embedding gather itself is left to XLA; an in-kernel gather
    # would need scalar-prefetch + pl.Element row DMA.
    emb = jnp.take(params["embed"], text, axis=0)                 # [B, S, D] bf16
    mask = attention_mask.astype(jnp.float32)[:, :, None]         # [B, S, 1] f32
    return fused_pool_and_classify(
        emb, mask, params["pool_w"], params["head_w"], params["head_b"])


def init_params(key, vocab_size=VOCAB):
    k1, k2, k3, k4 = jax.random.split(key, 4)
    head_w = jax.random.normal(k3, (EMBED_DIM, NUM_CLASSES), jnp.float32) * 0.02
    head_b = jax.random.normal(k4, (1, NUM_CLASSES), jnp.float32) * 0.02
    return {
        # frozen stand-in backbone params, stored in their final kernel dtype (bf16)
        "embed": (jax.random.normal(k1, (vocab_size, EMBED_DIM), jnp.float32)
                  * 0.02).astype(jnp.bfloat16),
        "pool_w": (jax.random.normal(k2, (EMBED_DIM, EMBED_DIM), jnp.float32)
                   * 0.02).astype(jnp.bfloat16),
        # classification head (nn.Linear(768, C)) pre-padded lane-dense ONCE here
        "head_w": jnp.pad(head_w, ((0, 0), (0, LANE - NUM_CLASSES))).astype(jnp.bfloat16),
        "head_b": jnp.pad(head_b, ((0, 0), (0, LANE - NUM_CLASSES))),   # f32
    }


if __name__ == "__main__":
    key = jax.random.PRNGKey(0)
    pkey, tkey = jax.random.split(key)
    params = init_params(pkey)

    B, S = 8, 16
    text = jax.random.randint(tkey, (B, S), 0, VOCAB, dtype=jnp.int32)
    attention_mask = jnp.concatenate(
        [jnp.ones((B, S // 2), jnp.int32), jnp.zeros((B, S // 2), jnp.int32)], axis=1)

    fwd = jax.jit(text_classification_forward)
    logits = jax.block_until_ready(fwd(text, attention_mask, params))
    assert logits.shape == (B, NUM_CLASSES)
    assert logits.dtype == jnp.float32

    # reference check of the fused Pallas kernel against plain (f32) JAX math
    # using the same bf16-stored parameters.
    emb = params["embed"][text].astype(jnp.float32)
    m = attention_mask.astype(jnp.float32)[..., None]
    pooled = (emb * m).sum(1) / jnp.maximum(m.sum(1), 1.0)
    ref = (jnp.tanh(pooled @ params["pool_w"].astype(jnp.float32))
           @ params["head_w"].astype(jnp.float32)[:, :NUM_CLASSES]
           + params["head_b"][:, :NUM_CLASSES])
    assert jnp.allclose(logits, ref, atol=3e-3, rtol=3e-2), (
        float(jnp.max(jnp.abs(logits - ref))))

    print("KERNEL_OK")
</pallas_src>

<mosaic_0001>
module attributes {stable_mosaic.version = 11 : i64} {
  func.func @_fused_kernel(%arg0: i32, %arg1: memref<8x16x768xbf16, #tpu.memory_space<vmem>>, %arg2: memref<8x16x1xf32, #tpu.memory_space<vmem>>, %arg3: memref<768x768xbf16, #tpu.memory_space<vmem>>, %arg4: memref<768x128xbf16, #tpu.memory_space<vmem>>, %arg5: memref<1x128xf32, #tpu.memory_space<vmem>>, %arg6: memref<8x128xf32, #tpu.memory_space<vmem>>) attributes {dimension_semantics = [#tpu.dimension_semantics<parallel>], iteration_bounds = array<i64: 1>, scalar_prefetch = 0 : i64, scratch_operands = 0 : i64, tpu.core_type = #tpu.core_type<tc>, window_params = [{transform_indices = @transform_0, window_bounds = array<i64: 8, 16, 768>}, {transform_indices = @transform_1, window_bounds = array<i64: 8, 16, 1>}, {pipeline_mode = #tpu.pipeline_mode<synchronous>, transform_indices = @transform_2, window_bounds = array<i64: 768, 768>}, {pipeline_mode = #tpu.pipeline_mode<synchronous>, transform_indices = @transform_3, window_bounds = array<i64: 768, 128>}, {pipeline_mode = #tpu.pipeline_mode<synchronous>, transform_indices = @transform_4, window_bounds = array<i64: 1, 128>}, {transform_indices = @transform_5, window_bounds = array<i64: 8, 128>}]} {
    %c0 = arith.constant 0 : index
    %c0_0 = arith.constant 0 : index
    %c0_1 = arith.constant 0 : index
    %0 = vector.load %arg2[%c0, %c0_0, %c0_1] : memref<8x16x1xf32, #tpu.memory_space<vmem>>, vector<8x16x1xf32>
    %c0_2 = arith.constant 0 : index
    %c0_3 = arith.constant 0 : index
    %c0_4 = arith.constant 0 : index
    %1 = vector.load %arg1[%c0_2, %c0_3, %c0_4] : memref<8x16x768xbf16, #tpu.memory_space<vmem>>, vector<8x16x768xbf16>
    %2 = arith.extf %1 : vector<8x16x768xbf16> to vector<8x16x768xf32>
    %3 = vector.broadcast %0 : vector<8x16x1xf32> to vector<8x16x768xf32>
    %4 = arith.mulf %2, %3 : vector<8x16x768xf32>
    %cst = arith.constant dense<0.000000e+00> : vector<8x768xf32>
    %5 = vector.multi_reduction <add>, %4, %cst [1] : vector<8x16x768xf32> to vector<8x768xf32>
    %cst_5 = arith.constant dense<0.000000e+00> : vector<8x1xf32>
    %6 = vector.multi_reduction <add>, %0, %cst_5 [1] : vector<8x16x1xf32> to vector<8x1xf32>
    %cst_6 = arith.constant 1.000000e+00 : f32
    %7 = vector.broadcast %cst_6 : f32 to vector<8x1xf32>
    %8 = arith.maximumf %6, %7 : vector<8x1xf32>
    %9 = vector.broadcast %8 : vector<8x1xf32> to vector<8x768xf32>
    %10 = arith.divf %5, %9 : vector<8x768xf32>
    %11 = arith.truncf %10 : vector<8x768xf32> to vector<8x768xbf16>
    %c0_7 = arith.constant 0 : index
    %c0_8 = arith.constant 0 : index
    %12 = vector.load %arg3[%c0_7, %c0_8] : memref<768x768xbf16, #tpu.memory_space<vmem>>, vector<768x768xbf16>
    %cst_9 = arith.constant dense<0.000000e+00> : vector<8x768xf32>
    %13 = tpu.matmul %11, %12, %cst_9 {dimension_numbers = #tpu.dot_dimension_numbers<[1], [0], [0], [1], [0, 0, 1, 1], [], []>} : vector<8x768xbf16>, vector<768x768xbf16>, vector<8x768xf32> -> vector<8x768xf32>
    %14 = math.tanh %13 : vector<8x768xf32>
    %15 = arith.truncf %14 : vector<8x768xf32> to vector<8x768xbf16>
    %c0_10 = arith.constant 0 : index
    %c0_11 = arith.constant 0 : index
    %16 = vector.load %arg4[%c0_10, %c0_11] : memref<768x128xbf16, #tpu.memory_space<vmem>>, vector<768x128xbf16>
    %cst_12 = arith.constant dense<0.000000e+00> : vector<8x128xf32>
    %17 = tpu.matmul %15, %16, %cst_12 {dimension_numbers = #tpu.dot_dimension_numbers<[1], [0], [0], [1], [0, 0, 1, 1], [], []>} : vector<8x768xbf16>, vector<768x128xbf16>, vector<8x128xf32> -> vector<8x128xf32>
    %c0_13 = arith.constant 0 : index
    %c0_14 = arith.constant 0 : index
    %18 = vector.load %arg5[%c0_13, %c0_14] : memref<1x128xf32, #tpu.memory_space<vmem>>, vector<1x128xf32>
    %19 = vector.broadcast %18 : vector<1x128xf32> to vector<8x128xf32>
    %20 = arith.addf %17, %19 : vector<8x128xf32>
    %c0_15 = arith.constant 0 : index
    %c0_16 = arith.constant 0 : index
    %21 = vector.load %arg6[%c0_15, %c0_16] : memref<8x128xf32, #tpu.memory_space<vmem>>, vector<8x128xf32>
    tpu.vector_store %arg6[%c0_15, %c0_16], %20 {strides = array<i32>} : memref<8x128xf32, #tpu.memory_space<vmem>>, vector<8x128xf32>,
    return
  }
  func.func @transform_0(%arg0: i32) -> (i32, i32, i32) {
    %c0_i32 = arith.constant 0 : i32
    %c0_i32_0 = arith.constant 0 : i32
    %c0_i32_1 = arith.constant 0 : i32
    return %arg0, %c0_i32, %c0_i32_0 : i32, i32, i32
  }
  func.func @transform_1(%arg0: i32) -> (i32, i32, i32) {
    %c0_i32 = arith.constant 0 : i32
    %c0_i32_0 = arith.constant 0 : i32
    %c0_i32_1 = arith.constant 0 : i32
    return %arg0, %c0_i32, %c0_i32_0 : i32, i32, i32
  }
  func.func @transform_2(%arg0: i32) -> (i32, i32) {
    %c0_i32 = arith.constant 0 : i32
    %c0_i32_0 = arith.constant 0 : i32
    %c0_i32_1 = arith.constant 0 : i32
    return %c0_i32, %c0_i32_0 : i32, i32
  }
  func.func @transform_3(%arg0: i32) -> (i32, i32) {
    %c0_i32 = arith.constant 0 : i32
    %c0_i32_0 = arith.constant 0 : i32
    %c0_i32_1 = arith.constant 0 : i32
    return %c0_i32, %c0_i32_0 : i32, i32
  }
  func.func @transform_4(%arg0: i32) -> (i32, i32) {
    %c0_i32 = arith.constant 0 : i32
    %c0_i32_0 = arith.constant 0 : i32
    %c0_i32_1 = arith.constant 0 : i32
    return %c0_i32, %c0_i32_0 : i32, i32
  }
  func.func @transform_5(%arg0: i32) -> (i32, i32) {
    %c0_i32 = arith.constant 0 : i32
    %c0_i32_0 = arith.constant 0 : i32
    return %arg0, %c0_i32 : i32, i32
  }
}

</mosaic_0001>

<llo_original>
// kernel: text_classification_forward.1
$region0: #{text_classification_forward.1}
  #allocation0 [shape = 'u32[]', space=smem, size = 0x4, offset = 0x4, fixed_abs, tag = 'smem constant byte address 0x4 - core index']
  #allocation1 [shape = 'u32[144,128]{1,0:T(1,128)}', space=vmem, size = 0x12000, scoped, tag = 'internal scratch']
  %s0 = inlined_call_operand.vmem [shape: bf16[8,16,768], index: 0, kind: input, shape index: {}]
  %s1 = inlined_call_operand.vmem [shape: f32[8,16,1], index: 1, kind: input, shape index: {}]
  %s2 = inlined_call_operand.vmem [shape: bf16[768,768], index: 2, kind: input, shape index: {}]
  %s3 = inlined_call_operand.vmem [shape: bf16[768,128], index: 3, kind: input, shape index: {}]
  %s4 = inlined_call_operand.vmem [shape: f32[1,128], index: 4, kind: input, shape index: {}]
  %s5 = inlined_call_operand.vmem [shape: f32[8,128], index: 5, kind: output, shape index: {}]
  %s6 = sld [smem:[#allocation0]]
  $region30: #{text_classification_forward.1} parent=0
    _
  %s8 = ssub.s32 1, %s6
  %s9 = scalar_select 0, %s8, %s6
  // Predicated region
  $region2: #{text_classification_forward.1} parent=0 // pred_check
    _
  $region3: #{text_classification_forward.1} parent=0 // pred_check_branch
    %11 = sbr.rel (0) target = $region5
  $region4: #{text_classification_forward.1} parent=0 // pred_region
    _
  $region5: #{text_classification_forward.1} parent=0 // pred_fallthru
    _
  // Predicated region
  $region6: #{text_classification_forward.1} parent=0 // pred_check
    _
  $region7: #{text_classification_forward.1} parent=0 // pred_check_branch
    %13 = sbr.rel (0) target = $region9
  $region8: #{text_classification_forward.1} parent=0 // pred_region
    _
  $region9: #{text_classification_forward.1} parent=0 // pred_fallthru
    _
  // Predicated region
  $region10: #{text_classification_forward.1} parent=0 // pred_check
    _
  $region11: #{text_classification_forward.1} parent=0 // pred_check_branch
    %15 = sbr.rel (0) target = $region13
  $region12: #{text_classification_forward.1} parent=0 // pred_region
    _
  $region13: #{text_classification_forward.1} parent=0 // pred_fallthru
    _
  // Predicated region
  $region14: #{text_classification_forward.1} parent=0 // pred_check
    _
  $region15: #{text_classification_forward.1} parent=0 // pred_check_branch
    %17 = sbr.rel (0) target = $region17
  $region16: #{text_classification_forward.1} parent=0 // pred_region
    _
  $region17: #{text_classification_forward.1} parent=0 // pred_fallthru
    _
  // Predicated region
  $region18: #{text_classification_forward.1} parent=0 // pred_check
    _
  $region19: #{text_classification_forward.1} parent=0 // pred_check_branch
    %19 = sbr.rel (0) target = $region21
  $region20: #{text_classification_forward.1} parent=0 // pred_region
    _
  $region21: #{text_classification_forward.1} parent=0 // pred_fallthru
    _
  %v21 = vld [vmem:[%s1] sm:$0xff]
  %v22 = vld [vmem:[%s1 + $0x8] sm:$0xff]
  %v23 = vld [vmem:[%s1 + $0x10] sm:$0xff]
  %v24 = vld [vmem:[%s1 + $0x18] sm:$0xff]
  %v25 = vld [vmem:[%s1 + $0x20] sm:$0xff]
  %v26 = vld [vmem:[%s1 + $0x28] sm:$0xff]
  %v27 = vld [vmem:[%s1 + $0x30] sm:$0xff]
  %v28 = vld [vmem:[%s1 + $0x38] sm:$0xff]
  %v29 = vld [vmem:[%s1 + $0x40] sm:$0xff]
  %v30 = vld [vmem:[%s1 + $0x48] sm:$0xff]
  %v31 = vld [vmem:[%s1 + $0x50] sm:$0xff]
  %v32 = vld [vmem:[%s1 + $0x58] sm:$0xff]
  %v33 = vld [vmem:[%s1 + $0x60] sm:$0xff]
  %v34 = vld [vmem:[%s1 + $0x68] sm:$0xff]
  %v35 = vld [vmem:[%s1 + $0x70] sm:$0xff]
  %v36 = vld [vmem:[%s1 + $0x78] sm:$0xff]
  %v37 = vld [vmem:[%s0] sm:$0xff]
  %v38 = vld [vmem:[%s0 + $0x8] sm:$0xff]
  %v39 = vld [vmem:[%s0 + $0x10] sm:$0xff]
  %v40 = vld [vmem:[%s0 + $0x18] sm:$0xff]
  %v41 = vld [vmem:[%s0 + $0x20] sm:$0xff]
  %v42 = vld [vmem:[%s0 + $0x28] sm:$0xff]
  %v43 = vld [vmem:[%s0 + $0x30] sm:$0xff]
  %v44 = vld [vmem:[%s0 + $0x38] sm:$0xff]
  %v45 = vld [vmem:[%s0 + $0x40] sm:$0xff]
  %v46 = vld [vmem:[%s0 + $0x48] sm:$0xff]
  %v47 = vld [vmem:[%s0 + $0x50] sm:$0xff]
  %v48 = vld [vmem:[%s0 + $0x58] sm:$0xff]
  %v49 = vld [vmem:[%s0 + $0x60] sm:$0xff]
  %v50 = vld [vmem:[%s0 + $0x68] sm:$0xff]
  %v51 = vld [vmem:[%s0 + $0x70] sm:$0xff]
  %v52 = vld [vmem:[%s0 + $0x78] sm:$0xff]
  %v53 = vld [vmem:[%s0 + $0x80] sm:$0xff]
  %v54 = vld [vmem:[%s0 + $0x88] sm:$0xff]
  %v55 = vld [vmem:[%s0 + $0x90] sm:$0xff]
  %v56 = vld [vmem:[%s0 + $0x98] sm:$0xff]
  %v57 = vld [vmem:[%s0 + $0xa0] sm:$0xff]
  %v58 = vld [vmem:[%s0 + $0xa8] sm:$0xff]
  %v59 = vld [vmem:[%s0 + $0xb0] sm:$0xff]
  %v60 = vld [vmem:[%s0 + $0xb8] sm:$0xff]
  %v61 = vld [vmem:[%s0 + $0xc0] sm:$0xff]
  %v62 = vld [vmem:[%s0 + $0xc8] sm:$0xff]
  %v63 = vld [vmem:[%s0 + $0xd0] sm:$0xff]
  %v64 = vld [vmem:[%s0 + $0xd8] sm:$0xff]
  %v65 = vld [vmem:[%s0 + $0xe0] sm:$0xff]
  %v66 = vld [vmem:[%s0 + $0xe8] sm:$0xff]
  %v67 = vld [vmem:[%s0 + $0xf0] sm:$0xff]
  %v68 = vld [vmem:[%s0 + $0xf8] sm:$0xff]
  %v69 = vld [vmem:[%s0 + $0x100] sm:$0xff]
  %v70 = vld [vmem:[%s0 + $0x108] sm:$0xff]
  %v71 = vld [vmem:[%s0 + $0x110] sm:$0xff]
  %v72 = vld [vmem:[%s0 + $0x118] sm:$0xff]
  %v73 = vld [vmem:[%s0 + $0x120] sm:$0xff]
  %v74 = vld [vmem:[%s0 + $0x128] sm:$0xff]
  %v75 = vld [vmem:[%s0 + $0x130] sm:$0xff]
  %v76 = vld [vmem:[%s0 + $0x138] sm:$0xff]
  %v77 = vld [vmem:[%s0 + $0x140] sm:$0xff]
  %v78 = vld [vmem:[%s0 + $0x148] sm:$0xff]
  %v79 = vld [vmem:[%s0 + $0x150] sm:$0xff]
  %v80 = vld [vmem:[%s0 + $0x158] sm:$0xff]
  %v81 = vld [vmem:[%s0 + $0x160] sm:$0xff]
  %v82 = vld [vmem:[%s0 + $0x168] sm:$0xff]
  %v83 = vld [vmem:[%s0 + $0x170] sm:$0xff]
  %v84 = vld [vmem:[%s0 + $0x178] sm:$0xff]
  %v85 = vunpack.c.l.bf16 %v37
  %v86 = vunpack.c.h.bf16 %v37
  %v87 = vunpack.c.l.bf16 %v38
  %v88 = vunpack.c.h.bf16 %v38
  %v89 = vunpack.c.l.bf16 %v39
  %v90 = vunpack.c.h.bf16 %v39
  %v91 = vunpack.c.l.bf16 %v40
  %v92 = vunpack.c.h.bf16 %v40
  %v93 = vunpack.c.l.bf16 %v41
  %v94 = vunpack.c.h.bf16 %v41
  %v95 = vunpack.c.l.bf16 %v42
  %v96 = vunpack.c.h.bf16 %v42
  %v97 = vunpack.c.l.bf16 %v43
  %v98 = vunpack.c.h.bf16 %v43
  %v99 = vunpack.c.l.bf16 %v44
  %v100 = vunpack.c.h.bf16 %v44
  %v101 = vunpack.c.l.bf16 %v45
  %v102 = vunpack.c.h.bf16 %v45
  %v103 = vunpack.c.l.bf16 %v46
  %v104 = vunpack.c.h.bf16 %v46
  %v105 = vunpack.c.l.bf16 %v47
  %v106 = vunpack.c.h.bf16 %v47
  %v107 = vunpack.c.l.bf16 %v48
  %v108 = vunpack.c.h.bf16 %v48
  %v109 = vunpack.c.l.bf16 %v49
  %v110 = vunpack.c.h.bf16 %v49
  %v111 = vunpack.c.l.bf16 %v50
  %v112 = vunpack.c.h.bf16 %v50
  %v113 = vunpack.c.l.bf16 %v51
  %v114 = vunpack.c.h.bf16 %v51
  %v115 = vunpack.c.l.bf16 %v52
  %v116 = vunpack.c.h.bf16 %v52
  %v117 = vunpack.c.l.bf16 %v53
  %v118 = vunpack.c.h.bf16 %v53
  %v119 = vunpack.c.l.bf16 %v54
  %v120 = vunpack.c.h.bf16 %v54
  %v121 = vunpack.c.l.bf16 %v55
  %v122 = vunpack.c.h.bf16 %v55
  %v123 = vunpack.c.l.bf16 %v56
  %v124 = vunpack.c.h.bf16 %v56
  %v125 = vunpack.c.l.bf16 %v57
  %v126 = vunpack.c.h.bf16 %v57
  %v127 = vunpack.c.l.bf16 %v58
  %v128 = vunpack.c.h.bf16 %v58
  %v129 = vunpack.c.l.bf16 %v59
  %v130 = vunpack.c.h.bf16 %v59
  %v131 = vunpack.c.l.bf16 %v60
  %v132 = vunpack.c.h.bf16 %v60
  %v133 = vunpack.c.l.bf16 %v61
  %v134 = vunpack.c.h.bf16 %v61
  %v135 = vunpack.c.l.bf16 %v62
  %v136 = vunpack.c.h.bf16 %v62
  %v137 = vunpack.c.l.bf16 %v63
  %v138 = vunpack.c.h.bf16 %v63
  %v139 = vunpack.c.l.bf16 %v64
  %v140 = vunpack.c.h.bf16 %v64
  %v141 = vunpack.c.l.bf16 %v65
  %v142 = vunpack.c.h.bf16 %v65
  %v143 = vunpack.c.l.bf16 %v66
  %v144 = vunpack.c.h.bf16 %v66
  %v145 = vunpack.c.l.bf16 %v67
  %v146 = vunpack.c.h.bf16 %v67
  %v147 = vunpack.c.l.bf16 %v68
  %v148 = vunpack.c.h.bf16 %v68
  %v149 = vunpack.c.l.bf16 %v69
  %v150 = vunpack.c.h.bf16 %v69
  %v151 = vunpack.c.l.bf16 %v70
  %v152 = vunpack.c.h.bf16 %v70
  %v153 = vunpack.c.l.bf16 %v71
  %v154 = vunpack.c.h.bf16 %v71
  %v155 = vunpack.c.l.bf16 %v72
  %v156 = vunpack.c.h.bf16 %v72
  %v157 = vunpack.c.l.bf16 %v73
  %v158 = vunpack.c.h.bf16 %v73
  %v159 = vunpack.c.l.bf16 %v74
  %v160 = vunpack.c.h.bf16 %v74
  %v161 = vunpack.c.l.bf16 %v75
  %v162 = vunpack.c.h.bf16 %v75
  %v163 = vunpack.c.l.bf16 %v76
  %v164 = vunpack.c.h.bf16 %v76
  %v165 = vunpack.c.l.bf16 %v77
  %v166 = vunpack.c.h.bf16 %v77
  %v167 = vunpack.c.l.bf16 %v78
  %v168 = vunpack.c.h.bf16 %v78
  %v169 = vunpack.c.l.bf16 %v79
  %v170 = vunpack.c.h.bf16 %v79
  %v171 = vunpack.c.l.bf16 %v80
  %v172 = vunpack.c.h.bf16 %v80
  %v173 = vunpack.c.l.bf16 %v81
  %v174 = vunpack.c.h.bf16 %v81
  %v175 = vunpack.c.l.bf16 %v82
  %v176 = vunpack.c.h.bf16 %v82
  %v177 = vunpack.c.l.bf16 %v83
  %v178 = vunpack.c.h.bf16 %v83
  %v179 = vunpack.c.l.bf16 %v84
  %v180 = vunpack.c.h.bf16 %v84
  %182 = vset.pattern.permute.xlu0 0
  %183 = vperm.xlu0 %182, %v21
  %v184 = vpop.permute.xlu0 %183
  %187 = vset.pattern.permute.xlu0 0
  %188 = vperm.xlu0 %187, %v22
  %v189 = vpop.permute.xlu0 %188
  %192 = vset.pattern.permute.xlu0 0
  %193 = vperm.xlu0 %192, %v23
  %v194 = vpop.permute.xlu0 %193
  %197 = vset.pattern.permute.xlu0 0
  %198 = vperm.xlu0 %197, %v24
  %v199 = vpop.permute.xlu0 %198
  %202 = vset.pattern.permute.xlu0 0
  %203 = vperm.xlu0 %202, %v25
  %v204 = vpop.permute.xlu0 %203
  %207 = vset.pattern.permute.xlu0 0
  %208 = vperm.xlu0 %207, %v26
  %v209 = vpop.permute.xlu0 %208
  %212 = vset.pattern.permute.xlu0 0
  %213 = vperm.xlu0 %212, %v27
  %v214 = vpop.permute.xlu0 %213
  %217 = vset.pattern.permute.xlu0 0
  %218 = vperm.xlu0 %217, %v28
  %v219 = vpop.permute.xlu0 %218
  %222 = vset.pattern.permute.xlu0 0
  %223 = vperm.xlu0 %222, %v29
  %v224 = vpop.permute.xlu0 %223
  %227 = vset.pattern.permute.xlu0 0
  %228 = vperm.xlu0 %227, %v30
  %v229 = vpop.permute.xlu0 %228
  %232 = vset.pattern.permute.xlu0 0
  %233 = vperm.xlu0 %232, %v31
  %v234 = vpop.permute.xlu0 %233
  %237 = vset.pattern.permute.xlu0 0
  %238 = vperm.xlu0 %237, %v32
  %v239 = vpop.permute.xlu0 %238
  %242 = vset.pattern.permute.xlu0 0
  %243 = vperm.xlu0 %242, %v33
  %v244 = vpop.permute.xlu0 %243
  %247 = vset.pattern.permute.xlu0 0
  %248 = vperm.xlu0 %247, %v34
  %v249 = vpop.permute.xlu0 %248
  %252 = vset.pattern.permute.xlu0 0
  %253 = vperm.xlu0 %252, %v35
  %v254 = vpop.permute.xlu0 %253
  %257 = vset.pattern.permute.xlu0 0
  %258 = vperm.xlu0 %257, %v36
  %v259 = vpop.permute.xlu0 %258
  %v261 = vmul.f32 %v85, %v184
  %v262 = vmul.f32 %v86, %v184
  %v263 = vmul.f32 %v87, %v184
  %v264 = vmul.f32 %v88, %v184
  %v265 = vmul.f32 %v89, %v184
  %v266 = vmul.f32 %v90, %v184
  %v267 = vmul.f32 %v91, %v189
  %v268 = vmul.f32 %v92, %v189
  %v269 = vmul.f32 %v93, %v189
  %v270 = vmul.f32 %v94, %v189
  %v271 = vmul.f32 %v95, %v189
  %v272 = vmul.f32 %v96, %v189
  %v273 = vmul.f32 %v97, %v194
  %v274 = vmul.f32 %v98, %v194
  %v275 = vmul.f32 %v99, %v194
  %v276 = vmul.f32 %v100, %v194
  %v277 = vmul.f32 %v101, %v194
  %v278 = vmul.f32 %v102, %v194
  %v279 = vmul.f32 %v103, %v199
  %v280 = vmul.f32 %v104, %v199
  %v281 = vmul.f32 %v105, %v199
  %v282 = vmul.f32 %v106, %v199
  %v283 = vmul.f32 %v107, %v199
  %v284 = vmul.f32 %v108, %v199
  %v285 = vmul.f32 %v109, %v204
  %v286 = vmul.f32 %v110, %v204
  %v287 = vmul.f32 %v111, %v204
  %v288 = vmul.f32 %v112, %v204
  %v289 = vmul.f32 %v113, %v204
  %v290 = vmul.f32 %v114, %v204
  %v291 = vmul.f32 %v115, %v209
  %v292 = vmul.f32 %v116, %v209
  %v293 = vmul.f32 %v117, %v209
  %v294 = vmul.f32 %v118, %v209
  %v295 = vmul.f32 %v119, %v209
  %v296 = vmul.f32 %v120, %v209
  %v297 = vmul.f32 %v121, %v214
  %v298 = vmul.f32 %v122, %v214
  %v299 = vmul.f32 %v123, %v214
  %v300 = vmul.f32 %v124, %v214
  %v301 = vmul.f32 %v125, %v214
  %v302 = vmul.f32 %v126, %v214
  %v303 = vmul.f32 %v127, %v219
  %v304 = vmul.f32 %v128, %v219
  %v305 = vmul.f32 %v129, %v219
  %v306 = vmul.f32 %v130, %v219
  %v307 = vmul.f32 %v131, %v219
  %v308 = vmul.f32 %v132, %v219
  %v309 = vmul.f32 %v133, %v224
  %v310 = vmul.f32 %v134, %v224
  %v311 = vmul.f32 %v135, %v224
  %v312 = vmul.f32 %v136, %v224
  %v313 = vmul.f32 %v137, %v224
  %v314 = vmul.f32 %v138, %v224
  %v315 = vmul.f32 %v139, %v229
  %v316 = vmul.f32 %v140, %v229
  %v317 = vmul.f32 %v141, %v229
  %v318 = vmul.f32 %v142, %v229
  %v319 = vmul.f32 %v143, %v229
  %v320 = vmul.f32 %v144, %v229
  %v321 = vmul.f32 %v145, %v234
  %v322 = vmul.f32 %v146, %v234
  %v323 = vmul.f32 %v147, %v234
  %v324 = vmul.f32 %v148, %v234
  %v325 = vmul.f32 %v149, %v234
  %v326 = vmul.f32 %v150, %v234
  %v327 = vmul.f32 %v151, %v239
  %v328 = vmul.f32 %v152, %v239
  %v329 = vmul.f32 %v153, %v239
  %v330 = vmul.f32 %v154, %v239
  %v331 = vmul.f32 %v155, %v239
  %v332 = vmul.f32 %v156, %v239
  %v333 = vmul.f32 %v157, %v244
  %v334 = vmul.f32 %v158, %v244
  %v335 = vmul.f32 %v159, %v244
  %v336 = vmul.f32 %v160, %v244
  %v337 = vmul.f32 %v161, %v244
  %v338 = vmul.f32 %v162, %v244
  %v339 = vmul.f32 %v163, %v249
  %v340 = vmul.f32 %v164, %v249
  %v341 = vmul.f32 %v165, %v249
  %v342 = vmul.f32 %v166, %v249
  %v343 = vmul.f32 %v167, %v249
  %v344 = vmul.f32 %v168, %v249
  %v345 = vmul.f32 %v169, %v254
  %v346 = vmul.f32 %v170, %v254
  %v347 = vmul.f32 %v171, %v254
  %v348 = vmul.f32 %v172, %v254
  %v349 = vmul.f32 %v173, %v254
  %v350 = vmul.f32 %v174, %v254
  %v351 = vmul.f32 %v175, %v259
  %v352 = vmul.f32 %v176, %v259
  %v353 = vmul.f32 %v177, %v259
  %v354 = vmul.f32 %v178, %v259
  %v355 = vmul.f32 %v179, %v259
  %v356 = vmul.f32 %v180, %v259
  %v357 = vadd.f32 %v261, %v267
  %v358 = vrot.slane %v357, 4
  %v359 = vadd.f32 %v357, %v358
  %v360 = vrot.slane %v359, 2
  %v361 = vadd.f32 %v359, %v360
  %v362 = vrot.slane %v361, 1
  %v363 = vadd.f32 %v361, %v362
  %v364 = vadd.f32 %v262, %v268
  %v365 = vrot.slane %v364, 4
  %v366 = vadd.f32 %v364, %v365
  %v367 = vrot.slane %v366, 2
  %v368 = vadd.f32 %v366, %v367
  %v369 = vrot.slane %v368, 1
  %v370 = vadd.f32 %v368, %v369
  %v371 = vadd.f32 %v263, %v269
  %v372 = vrot.slane %v371, 4
  %v373 = vadd.f32 %v371, %v372
  %v374 = vrot.slane %v373, 2
  %v375 = vadd.f32 %v373, %v374
  %v376 = vrot.slane %v375, 1
  %v377 = vadd.f32 %v375, %v376
  %v378 = vadd.f32 %v264, %v270
  %v379 = vrot.slane %v378, 4
  %v380 = vadd.f32 %v378, %v379
  %v381 = vrot.slane %v380, 2
  %v382 = vadd.f32 %v380, %v381
  %v383 = vrot.slane %v382, 1
  %v384 = vadd.f32 %v382, %v383
  %v385 = vadd.f32 %v265, %v271
  %v386 = vrot.slane %v385, 4
  %v387 = vadd.f32 %v385, %v386
  %v388 = vrot.slane %v387, 2
  %v389 = vadd.f32 %v387, %v388
  %v390 = vrot.slane %v389, 1
  %v391 = vadd.f32 %v389, %v390
  %v392 = vadd.f32 %v266, %v272
  %v393 = vrot.slane %v392, 4
  %v394 = vadd.f32 %v392, %v393
  %v395 = vrot.slane %v394, 2
  %v396 = vadd.f32 %v394, %v395
  %v397 = vrot.slane %v396, 1
  %v398 = vadd.f32 %v396, %v397
  %v399 = vadd.f32 %v273, %v279
  %v400 = vrot.slane %v399, 4
  %v401 = vadd.f32 %v399, %v400
  %v402 = vrot.slane %v401, 2
  %v403 = vadd.f32 %v401, %v402
  %v404 = vrot.slane %v403, 1
  %v405 = vadd.f32 %v403, %v404
  %v406 = vadd.f32 %v274, %v280
  %v407 = vrot.slane %v406, 4
  %v408 = vadd.f32 %v406, %v407
  %v409 = vrot.slane %v408, 2
  %v410 = vadd.f32 %v408, %v409
  %v411 = vrot.slane %v410, 1
  %v412 = vadd.f32 %v410, %v411
  %v413 = vadd.f32 %v275, %v281
  %v414 = vrot.slane %v413, 4
  %v415 = vadd.f32 %v413, %v414
  %v416 = vrot.slane %v415, 2
  %v417 = vadd.f32 %v415, %v416
  %v418 = vrot.slane %v417, 1
  %v419 = vadd.f32 %v417, %v418
  %v420 = vadd.f32 %v276, %v282
  %v421 = vrot.slane %v420, 4
  %v422 = vadd.f32 %v420, %v421
  %v423 = vrot.slane %v422, 2
  %v424 = vadd.f32 %v422, %v423
  %v425 = vrot.slane %v424, 1
  %v426 = vadd.f32 %v424, %v425
  %v427 = vadd.f32 %v277, %v283
  %v428 = vrot.slane %v427, 4
  %v429 = vadd.f32 %v427, %v428
  %v430 = vrot.slane %v429, 2
  %v431 = vadd.f32 %v429, %v430
  %v432 = vrot.slane %v431, 1
  %v433 = vadd.f32 %v431, %v432
  %v434 = vadd.f32 %v278, %v284
  %v435 = vrot.slane %v434, 4
  %v436 = vadd.f32 %v434, %v435
  %v437 = vrot.slane %v436, 2
  %v438 = vadd.f32 %v436, %v437
  %v439 = vrot.slane %v438, 1
  %v440 = vadd.f32 %v438, %v439
  %v441 = vadd.f32 %v285, %v291
  %v442 = vrot.slane %v441, 4
  %v443 = vadd.f32 %v441, %v442
  %v444 = vrot.slane %v443, 2
  %v445 = vadd.f32 %v443, %v444
  %v446 = vrot.slane %v445, 1
  %v447 = vadd.f32 %v445, %v446
  %v448 = vadd.f32 %v286, %v292
  %v449 = vrot.slane %v448, 4
  %v450 = vadd.f32 %v448, %v449
  %v451 = vrot.slane %v450, 2
  %v452 = vadd.f32 %v450, %v451
  %v453 = vrot.slane %v452, 1
  %v454 = vadd.f32 %v452, %v453
  %v455 = vadd.f32 %v287, %v293
  %v456 = vrot.slane %v455, 4
  %v457 = vadd.f32 %v455, %v456
  %v458 = vrot.slane %v457, 2
  %v459 = vadd.f32 %v457, %v458
  %v460 = vrot.slane %v459, 1
  %v461 = vadd.f32 %v459, %v460
  %v462 = vadd.f32 %v288, %v294
  %v463 = vrot.slane %v462, 4
  %v464 = vadd.f32 %v462, %v463
  %v465 = vrot.slane %v464, 2
  %v466 = vadd.f32 %v464, %v465
  %v467 = vrot.slane %v466, 1
  %v468 = vadd.f32 %v466, %v467
  %v469 = vadd.f32 %v289, %v295
  %v470 = vrot.slane %v469, 4
  %v471 = vadd.f32 %v469, %v470
  %v472 = vrot.slane %v471, 2
  %v473 = vadd.f32 %v471, %v472
  %v474 = vrot.slane %v473, 1
  %v475 = vadd.f32 %v473, %v474
  %v476 = vadd.f32 %v290, %v296
  %v477 = vrot.slane %v476, 4
  %v478 = vadd.f32 %v476, %v477
  %v479 = vrot.slane %v478, 2
  %v480 = vadd.f32 %v478, %v479
  %v481 = vrot.slane %v480, 1
  %v482 = vadd.f32 %v480, %v481
  %v483 = vadd.f32 %v297, %v303
  %v484 = vrot.slane %v483, 4
  %v485 = vadd.f32 %v483, %v484
  %v486 = vrot.slane %v485, 2
  %v487 = vadd.f32 %v485, %v486
  %v488 = vrot.slane %v487, 1
  %v489 = vadd.f32 %v487, %v488
  %v490 = vadd.f32 %v298, %v304
  %v491 = vrot.slane %v490, 4
  %v492 = vadd.f32 %v490, %v491
  %v493 = vrot.slane %v492, 2
  %v494 = vadd.f32 %v492, %v493
  %v495 = vrot.slane %v494, 1
  %v496 = vadd.f32 %v494, %v495
  %v497 = vadd.f32 %v299, %v305
  %v498 = vrot.slane %v497, 4
  %v499 = vadd.f32 %v497, %v498
  %v500 = vrot.slane %v499, 2
  %v501 = vadd.f32 %v499, %v500
  %v502 = vrot.slane %v501, 1
  %v503 = vadd.f32 %v501, %v502
  %v504 = vadd.f32 %v300, %v306
  %v505 = vrot.slane %v504, 4
  %v506 = vadd.f32 %v504, %v505
  %v507 = vrot.slane %v506, 2
  %v508 = vadd.f32 %v506, %v507
  %v509 = vrot.slane %v508, 1
  %v510 = vadd.f32 %v508, %v509
  %v511 = vadd.f32 %v301, %v307
  %v512 = vrot.slane %v511, 4
  %v513 = vadd.f32 %v511, %v512
  %v514 = vrot.slane %v513, 2
  %v515 = vadd.f32 %v513, %v514
  %v516 = vrot.slane %v515, 1
  %v517 = vadd.f32 %v515, %v516
  %v518 = vadd.f32 %v302, %v308
  %v519 = vrot.slane %v518, 4
  %v520 = vadd.f32 %v518, %v519
  %v521 = vrot.slane %v520, 2
  %v522 = vadd.f32 %v520, %v521
  %v523 = vrot.slane %v522, 1
  %v524 = vadd.f32 %v522, %v523
  %v525 = vadd.f32 %v309, %v315
  %v526 = vrot.slane %v525, 4
  %v527 = vadd.f32 %v525, %v526
  %v528 = vrot.slane %v527, 2
  %v529 = vadd.f32 %v527, %v528
  %v530 = vrot.slane %v529, 1
  %v531 = vadd.f32 %v529, %v530
  %v532 = vadd.f32 %v310, %v316
  %v533 = vrot.slane %v532, 4
  %v534 = vadd.f32 %v532, %v533
  %v535 = vrot.slane %v534, 2
  %v536 = vadd.f32 %v534, %v535
  %v537 = vrot.slane %v536, 1
  %v538 = vadd.f32 %v536, %v537
  %v539 = vadd.f32 %v311, %v317
  %v540 = vrot.slane %v539, 4
  %v541 = vadd.f32 %v539, %v540
  %v542 = vrot.slane %v541, 2
  %v543 = vadd.f32 %v541, %v542
  %v544 = vrot.slane %v543, 1
  %v545 = vadd.f32 %v543, %v544
  %v546 = vadd.f32 %v312, %v318
  %v547 = vrot.slane %v546, 4
  %v548 = vadd.f32 %v546, %v547
  %v549 = vrot.slane %v548, 2
  %v550 = vadd.f32 %v548, %v549
  %v551 = vrot.slane %v550, 1
  %v552 = vadd.f32 %v550, %v551
  %v553 = vadd.f32 %v313, %v319
  %v554 = vrot.slane %v553, 4
  %v555 = vadd.f32 %v553, %v554
  %v556 = vrot.slane %v555, 2
  %v557 = vadd.f32 %v555, %v556
  %v558 = vrot.slane %v557, 1
  %v559 = vadd.f32 %v557, %v558
  %v560 = vadd.f32 %v314, %v320
  %v561 = vrot.slane %v560, 4
  %v562 = vadd.f32 %v560, %v561
  %v563 = vrot.slane %v562, 2
  %v564 = vadd.f32 %v562, %v563
  %v565 = vrot.slane %v564, 1
  %v566 = vadd.f32 %v564, %v565
  %v567 = vadd.f32 %v321, %v327
  %v568 = vrot.slane %v567, 4
  %v569 = vadd.f32 %v567, %v568
  %v570 = vrot.slane %v569, 2
  %v571 = vadd.f32 %v569, %v570
  %v572 = vrot.slane %v571, 1
  %v573 = vadd.f32 %v571, %v572
  %v574 = vadd.f32 %v322, %v328
  %v575 = vrot.slane %v574, 4
  %v576 = vadd.f32 %v574, %v575
  %v577 = vrot.slane %v576, 2
  %v578 = vadd.f32 %v576, %v577
  %v579 = vrot.slane %v578, 1
  %v580 = vadd.f32 %v578, %v579
  %v581 = vadd.f32 %v323, %v329
  %v582 = vrot.slane %v581, 4
  %v583 = vadd.f32 %v581, %v582
  %v584 = vrot.slane %v583, 2
  %v585 = vadd.f32 %v583, %v584
  %v586 = vrot.slane %v585, 1
  %v587 = vadd.f32 %v585, %v586
  %v588 = vadd.f32 %v324, %v330
  %v589 = vrot.slane %v588, 4
  %v590 = vadd.f32 %v588, %v589
  %v591 = vrot.slane %v590, 2
  %v592 = vadd.f32 %v590, %v591
  %v593 = vrot.slane %v592, 1
  %v594 = vadd.f32 %v592, %v593
  %v595 = vadd.f32 %v325, %v331
  %v596 = vrot.slane %v595, 4
  %v597 = vadd.f32 %v595, %v596
  %v598 = vrot.slane %v597, 2
  %v599 = vadd.f32 %v597, %v598
  %v600 = vrot.slane %v599, 1
  %v601 = vadd.f32 %v599, %v600
  %v602 = vadd.f32 %v326, %v332
  %v603 = vrot.slane %v602, 4
  %v604 = vadd.f32 %v602, %v603
  %v605 = vrot.slane %v604, 2
  %v606 = vadd.f32 %v604, %v605
  %v607 = vrot.slane %v606, 1
  %v608 = vadd.f32 %v606, %v607
  %v609 = vadd.f32 %v333, %v339
  %v610 = vrot.slane %v609, 4
  %v611 = vadd.f32 %v609, %v610
  %v612 = vrot.slane %v611, 2
  %v613 = vadd.f32 %v611, %v612
  %v614 = vrot.slane %v613, 1
  %v615 = vadd.f32 %v613, %v614
  %v616 = vadd.f32 %v334, %v340
  %v617 = vrot.slane %v616, 4
  %v618 = vadd.f32 %v616, %v617
  %v619 = vrot.slane %v618, 2
  %v620 = vadd.f32 %v618, %v619
  %v621 = vrot.slane %v620, 1
  %v622 = vadd.f32 %v620, %v621
  %v623 = vadd.f32 %v335, %v341
  %v624 = vrot.slane %v623, 4
  %v625 = vadd.f32 %v623, %v624
  %v626 = vrot.slane %v625, 2
  %v627 = vadd.f32 %v625, %v626
  %v628 = vrot.slane %v627, 1
  %v629 = vadd.f32 %v627, %v628
  %v630 = vadd.f32 %v336, %v342
  %v631 = vrot.slane %v630, 4
  %v632 = vadd.f32 %v630, %v631
  %v633 = vrot.slane %v632, 2
  %v634 = vadd.f32 %v632, %v633
  %v635 = vrot.slane %v634, 1
  %v636 = vadd.f32 %v634, %v635
  %v637 = vadd.f32 %v337, %v343
  %v638 = vrot.slane %v637, 4
  %v639 = vadd.f32 %v637, %v638
  %v640 = vrot.slane %v639, 2
  %v641 = vadd.f32 %v639, %v640
  %v642 = vrot.slane %v641, 1
  %v643 = vadd.f32 %v641, %v642
  %v644 = vadd.f32 %v338, %v344
  %v645 = vrot.slane %v644, 4
  %v646 = vadd.f32 %v644, %v645
  %v647 = vrot.slane %v646, 2
  %v648 = vadd.f32 %v646, %v647
  %v649 = vrot.slane %v648, 1
  %v650 = vadd.f32 %v648, %v649
  %v651 = vadd.f32 %v345, %v351
  %v652 = vrot.slane %v651, 4
  %v653 = vadd.f32 %v651, %v652
  %v654 = vrot.slane %v653, 2
  %v655 = vadd.f32 %v653, %v654
  %v656 = vrot.slane %v655, 1
  %v657 = vadd.f32 %v655, %v656
  %v658 = vadd.f32 %v346, %v352
  %v659 = vrot.slane %v658, 4
  %v660 = vadd.f32 %v658, %v659
  %v661 = vrot.slane %v660, 2
  %v662 = vadd.f32 %v660, %v661
  %v663 = vrot.slane %v662, 1
  %v664 = vadd.f32 %v662, %v663
  %v665 = vadd.f32 %v347, %v353
  %v666 = vrot.slane %v665, 4
  %v667 = vadd.f32 %v665, %v666
  %v668 = vrot.slane %v667, 2
  %v669 = vadd.f32 %v667, %v668
  %v670 = vrot.slane %v669, 1
  %v671 = vadd.f32 %v669, %v670
  %v672 = vadd.f32 %v348, %v354
  %v673 = vrot.slane %v672, 4
  %v674 = vadd.f32 %v672, %v673
  %v675 = vrot.slane %v674, 2
  %v676 = vadd.f32 %v674, %v675
  %v677 = vrot.slane %v676, 1
  %v678 = vadd.f32 %v676, %v677
  %v679 = vadd.f32 %v349, %v355
  %v680 = vrot.slane %v679, 4
  %v681 = vadd.f32 %v679, %v680
  %v682 = vrot.slane %v681, 2
  %v683 = vadd.f32 %v681, %v682
  %v684 = vrot.slane %v683, 1
  %v685 = vadd.f32 %v683, %v684
  %v686 = vadd.f32 %v350, %v356
  %v687 = vrot.slane %v686, 4
  %v688 = vadd.f32 %v686, %v687
  %v689 = vrot.slane %v688, 2
  %v690 = vadd.f32 %v688, %v689
  %v691 = vrot.slane %v690, 1
  %v692 = vadd.f32 %v690, %v691
  %vm693 = vcmask 7168
  %v694 = vsel %vm693, %v21, 0.0
  %v695 = vsel %vm693, %v22, 0.0
  %v696 = vadd.f32 %v694, %v695
  %v697 = vrot.slane %v696, 4
  %v698 = vadd.f32 %v696, %v697
  %v699 = vrot.slane %v698, 2
  %v700 = vadd.f32 %v698, %v699
  %v701 = vrot.slane %v700, 1
  %v702 = vadd.f32 %v700, %v701
  %v703 = vsel %vm693, %v23, 0.0
  %v704 = vsel %vm693, %v24, 0.0
  %v705 = vadd.f32 %v703, %v704
  %v706 = vrot.slane %v705, 4
  %v707 = vadd.f32 %v705, %v706
  %v708 = vrot.slane %v707, 2
  %v709 = vadd.f32 %v707, %v708
  %v710 = vrot.slane %v709, 1
  %v711 = vadd.f32 %v709, %v710
  %v712 = vsel %vm693, %v25, 0.0
  %v713 = vsel %vm693, %v26, 0.0
  %v714 = vadd.f32 %v712, %v713
  %v715 = vrot.slane %v714, 4
  %v716 = vadd.f32 %v714, %v715
  %v717 = vrot.slane %v716, 2
  %v718 = vadd.f32 %v716, %v717
  %v719 = vrot.slane %v718, 1
  %v720 = vadd.f32 %v718, %v719
  %v721 = vsel %vm693, %v27, 0.0
  %v722 = vsel %vm693, %v28, 0.0
  %v723 = vadd.f32 %v721, %v722
  %v724 = vrot.slane %v723, 4
  %v725 = vadd.f32 %v723, %v724
  %v726 = vrot.slane %v725, 2
  %v727 = vadd.f32 %v725, %v726
  %v728 = vrot.slane %v727, 1
  %v729 = vadd.f32 %v727, %v728
  %v730 = vsel %vm693, %v29, 0.0
  %v731 = vsel %vm693, %v30, 0.0
  %v732 = vadd.f32 %v730, %v731
  %v733 = vrot.slane %v732, 4
  %v734 = vadd.f32 %v732, %v733
  %v735 = vrot.slane %v734, 2
  %v736 = vadd.f32 %v734, %v735
  %v737 = vrot.slane %v736, 1
  %v738 = vadd.f32 %v736, %v737
  %v739 = vsel %vm693, %v31, 0.0
  %v740 = vsel %vm693, %v32, 0.0
  %v741 = vadd.f32 %v739, %v740
  %v742 = vrot.slane %v741, 4
  %v743 = vadd.f32 %v741, %v742
  %v744 = vrot.slane %v743, 2
  %v745 = vadd.f32 %v743, %v744
  %v746 = vrot.slane %v745, 1
  %v747 = vadd.f32 %v745, %v746
  %v748 = vsel %vm693, %v33, 0.0
  %v749 = vsel %vm693, %v34, 0.0
  %v750 = vadd.f32 %v748, %v749
  %v751 = vrot.slane %v750, 4
  %v752 = vadd.f32 %v750, %v751
  %v753 = vrot.slane %v752, 2
  %v754 = vadd.f32 %v752, %v753
  %v755 = vrot.slane %v754, 1
  %v756 = vadd.f32 %v754, %v755
  %v757 = vsel %vm693, %v35, 0.0
  %v758 = vsel %vm693, %v36, 0.0
  %v759 = vadd.f32 %v757, %v758
  %v760 = vrot.slane %v759, 4
  %v761 = vadd.f32 %v759, %v760
  %v762 = vrot.slane %v761, 2
  %v763 = vadd.f32 %v761, %v762
  %v764 = vrot.slane %v763, 1
  %v765 = vadd.f32 %v763, %v764
  %v766 = vmax.f32 %v702, 1.0
  %v767 = vmax.f32 %v711, 1.0
  %v768 = vmax.f32 %v720, 1.0
  %v769 = vmax.f32 %v729, 1.0
  %v770 = vmax.f32 %v738, 1.0
  %v771 = vmax.f32 %v747, 1.0
  %v772 = vmax.f32 %v756, 1.0
  %v773 = vmax.f32 %v765, 1.0
  %775 = vset.pattern.permute.xlu0 0
  %776 = vperm.xlu0 %775, %v766
  %v777 = vpop.permute.xlu0 %776
  %780 = vset.pattern.permute.xlu0 0
  %781 = vperm.xlu0 %780, %v767
  %v782 = vpop.permute.xlu0 %781
  %785 = vset.pattern.permute.xlu0 0
  %786 = vperm.xlu0 %785, %v768
  %v787 = vpop.permute.xlu0 %786
  %790 = vset.pattern.permute.xlu0 0
  %791 = vperm.xlu0 %790, %v769
  %v792 = vpop.permute.xlu0 %791
  %795 = vset.pattern.permute.xlu0 0
  %796 = vperm.xlu0 %795, %v770
  %v797 = vpop.permute.xlu0 %796
  %800 = vset.pattern.permute.xlu0 0
  %801 = vperm.xlu0 %800, %v771
  %v802 = vpop.permute.xlu0 %801
  %805 = vset.pattern.permute.xlu0 0
  %806 = vperm.xlu0 %805, %v772
  %v807 = vpop.permute.xlu0 %806
  %810 = vset.pattern.permute.xlu0 0
  %811 = vperm.xlu0 %810, %v773
  %v812 = vpop.permute.xlu0 %811
  %v814 = vrcp.pop %v777
  %v815 = vmul.f32 %v363, %v814
  %v816 = vmul.f32 %v370, %v814
  %v817 = vmul.f32 %v377, %v814
  %v818 = vmul.f32 %v384, %v814
  %v819 = vmul.f32 %v391, %v814
  %v820 = vmul.f32 %v398, %v814
  %v821 = vrcp.pop %v782
  %v822 = vmul.f32 %v405, %v821
  %v823 = vmul.f32 %v412, %v821
  %v824 = vmul.f32 %v419, %v821
  %v825 = vmul.f32 %v426, %v821
  %v826 = vmul.f32 %v433, %v821
  %v827 = vmul.f32 %v440, %v821
  %v828 = vrcp.pop %v787
  %v829 = vmul.f32 %v447, %v828
  %v830 = vmul.f32 %v454, %v828
  %v831 = vmul.f32 %v461, %v828
  %v832 = vmul.f32 %v468, %v828
  %v833 = vmul.f32 %v475, %v828
  %v834 = vmul.f32 %v482, %v828
  %v835 = vrcp.pop %v792
  %v836 = vmul.f32 %v489, %v835
  %v837 = vmul.f32 %v496, %v835
  %v838 = vmul.f32 %v503, %v835
  %v839 = vmul.f32 %v510, %v835
  %v840 = vmul.f32 %v517, %v835
  %v841 = vmul.f32 %v524, %v835
  %v842 = vrcp.pop %v797
  %v843 = vmul.f32 %v531, %v842
  %v844 = vmul.f32 %v538, %v842
  %v845 = vmul.f32 %v545, %v842
  %v846 = vmul.f32 %v552, %v842
  %v847 = vmul.f32 %v559, %v842
  %v848 = vmul.f32 %v566, %v842
  %v849 = vrcp.pop %v802
  %v850 = vmul.f32 %v573, %v849
  %v851 = vmul.f32 %v580, %v849
  %v852 = vmul.f32 %v587, %v849
  %v853 = vmul.f32 %v594, %v849
  %v854 = vmul.f32 %v601, %v849
  %v855 = vmul.f32 %v608, %v849
  %v856 = vrcp.pop %v807
  %v857 = vmul.f32 %v615, %v856
  %v858 = vmul.f32 %v622, %v856
  %v859 = vmul.f32 %v629, %v856
  %v860 = vmul.f32 %v636, %v856
  %v861 = vmul.f32 %v643, %v856
  %v862 = vmul.f32 %v650, %v856
  %v863 = vrcp.pop %v812
  %v864 = vmul.f32 %v657, %v863
  %v865 = vmul.f32 %v664, %v863
  %v866 = vmul.f32 %v671, %v863
  %v867 = vmul.f32 %v678, %v863
  %v868 = vmul.f32 %v685, %v863
  %v869 = vmul.f32 %v692, %v863
  %v870 = vpack.c.bf16 %v815, %v815
  %v871 = vpack.c.bf16 %v816, %v816
  %v872 = vpack.c.bf16 %v817, %v817
  %v873 = vpack.c.bf16 %v818, %v818
  %v874 = vpack.c.bf16 %v819, %v819
  %v875 = vpack.c.bf16 %v820, %v820
  %v876 = vpack.c.bf16 %v822, %v822
  %v877 = vpack.c.bf16 %v823, %v823
  %v878 = vpack.c.bf16 %v824, %v824
  %v879 = vpack.c.bf16 %v825, %v825
  %v880 = vpack.c.bf16 %v826, %v826
  %v881 = vpack.c.bf16 %v827, %v827
  %v882 = vpack.c.bf16 %v829, %v829
  %v883 = vpack.c.bf16 %v830, %v830
  %v884 = vpack.c.bf16 %v831, %v831
  %v885 = vpack.c.bf16 %v832, %v832
  %v886 = vpack.c.bf16 %v833, %v833
  %v887 = vpack.c.bf16 %v834, %v834
  %v888 = vpack.c.bf16 %v836, %v836
  %v889 = vpack.c.bf16 %v837, %v837
  %v890 = vpack.c.bf16 %v838, %v838
  %v891 = vpack.c.bf16 %v839, %v839
  %v892 = vpack.c.bf16 %v840, %v840
  %v893 = vpack.c.bf16 %v841, %v841
  %v894 = vpack.c.bf16 %v843, %v843
  %v895 = vpack.c.bf16 %v844, %v844
  %v896 = vpack.c.bf16 %v845, %v845
  %v897 = vpack.c.bf16 %v846, %v846
  %v898 = vpack.c.bf16 %v847, %v847
  %v899 = vpack.c.bf16 %v848, %v848
  %v900 = vpack.c.bf16 %v850, %v850
  %v901 = vpack.c.bf16 %v851, %v851
  %v902 = vpack.c.bf16 %v852, %v852
  %v903 = vpack.c.bf16 %v853, %v853
  %v904 = vpack.c.bf16 %v854, %v854
  %v905 = vpack.c.bf16 %v855, %v855
  %v906 = vpack.c.bf16 %v857, %v857
  %v907 = vpack.c.bf16 %v858, %v858
  %v908 = vpack.c.bf16 %v859, %v859
  %v909 = vpack.c.bf16 %v860, %v860
  %v910 = vpack.c.bf16 %v861, %v861
  %v911 = vpack.c.bf16 %v862, %v862
  %v912 = vpack.c.bf16 %v864, %v864
  %v913 = vpack.c.bf16 %v865, %v865
  %v914 = vpack.c.bf16 %v866, %v866
  %v915 = vpack.c.bf16 %v867, %v867
  %v916 = vpack.c.bf16 %v868, %v868
  %v917 = vpack.c.bf16 %v869, %v869
  %v918 = vld [vmem:[%s2] sm:$0xff]
  %v919 = vld [vmem:[%s2 + $0x8] sm:$0xff]
  %v920 = vld [vmem:[%s2 + $0x10] sm:$0xff]
  %v921 = vld [vmem:[%s2 + $0x18] sm:$0xff]
  %v922 = vld [vmem:[%s2 + $0x20] sm:$0xff]
  %v923 = vld [vmem:[%s2 + $0x28] sm:$0xff]
  %v924 = vld [vmem:[%s2 + $0x30] sm:$0xff]
  %v925 = vld [vmem:[%s2 + $0x38] sm:$0xff]
  %v926 = vld [vmem:[%s2 + $0x40] sm:$0xff]
  %v927 = vld [vmem:[%s2 + $0x48] sm:$0xff]
  %v928 = vld [vmem:[%s2 + $0x50] sm:$0xff]
  %v929 = vld [vmem:[%s2 + $0x58] sm:$0xff]
  %v930 = vld [vmem:[%s2 + $0x60] sm:$0xff]
  %v931 = vld [vmem:[%s2 + $0x68] sm:$0xff]
  %v932 = vld [vmem:[%s2 + $0x70] sm:$0xff]
  %v933 = vld [vmem:[%s2 + $0x78] sm:$0xff]
  %v934 = vld [vmem:[%s2 + $0x80] sm:$0xff]
  %v935 = vld [vmem:[%s2 + $0x88] sm:$0xff]
  %v936 = vld [vmem:[%s2 + $0x90] sm:$0xff]
  %v937 = vld [vmem:[%s2 + $0x98] sm:$0xff]
  %v938 = vld [vmem:[%s2 + $0xa0] sm:$0xff]
  %v939 = vld [vmem:[%s2 + $0xa8] sm:$0xff]
  %v940 = vld [vmem:[%s2 + $0xb0] sm:$0xff]
  %v941 = vld [vmem:[%s2 + $0xb8] sm:$0xff]
  %v942 = vld [vmem:[%s2 + $0xc0] sm:$0xff]
  %v943 = vld [vmem:[%s2 + $0xc8] sm:$0xff]
  %v944 = vld [vmem:[%s2 + $0xd0] sm:$0xff]
  %v945 = vld [vmem:[%s2 + $0xd8] sm:$0xff]
  %v946 = vld [vmem:[%s2 + $0xe0] sm:$0xff]
  %v947 = vld [vmem:[%s2 + $0xe8] sm:$0xff]
  %v948 = vld [vmem:[%s2 + $0xf0] sm:$0xff]
  %v949 = vld [vmem:[%s2 + $0xf8] sm:$0xff]
  %v950 = vld [vmem:[%s2 + $0x100] sm:$0xff]
  %v951 = vld [vmem:[%s2 + $0x108] sm:$0xff]
  %v952 = vld [vmem:[%s2 + $0x110] sm:$0xff]
  %v953 = vld [vmem:[%s2 + $0x118] sm:$0xff]
  %v954 = vld [vmem:[%s2 + $0x120] sm:$0xff]
  %v955 = vld [vmem:[%s2 + $0x128] sm:$0xff]
  %v956 = vld [vmem:[%s2 + $0x130] sm:$0xff]
  %v957 = vld [vmem:[%s2 + $0x138] sm:$0xff]
  %v958 = vld [vmem:[%s2 + $0x140] sm:$0xff]
  %v959 = vld [vmem:[%s2 + $0x148] sm:$0xff]
  %v960 = vld [vmem:[%s2 + $0x150] sm:$0xff]
  %v961 = vld [vmem:[%s2 + $0x158] sm:$0xff]
  %v962 = vld [vmem:[%s2 + $0x160] sm:$0xff]
  %v963 = vld [vmem:[%s2 + $0x168] sm:$0xff]
  %v964 = vld [vmem:[%s2 + $0x170] sm:$0xff]
  %v965 = vld [vmem:[%s2 + $0x178] sm:$0xff]
  %v966 = vld [vmem:[%s2 + $0x180] sm:$0xff]
  %v967 = vld [vmem:[%s2 + $0x188] sm:$0xff]
  %v968 = vld [vmem:[%s2 + $0x190] sm:$0xff]
  %v969 = vld [vmem:[%s2 + $0x198] sm:$0xff]
  %v970 = vld [vmem:[%s2 + $0x1a0] sm:$0xff]
  %v971 = vld [vmem:[%s2 + $0x1a8] sm:$0xff]
  %v972 = vld [vmem:[%s2 + $0x1b0] sm:$0xff]
  %v973 = vld [vmem:[%s2 + $0x1b8] sm:$0xff]
  %v974 = vld [vmem:[%s2 + $0x1c0] sm:$0xff]
  %v975 = vld [vmem:[%s2 + $0x1c8] sm:$0xff]
  %v976 = vld [vmem:[%s2 + $0x1d0] sm:$0xff]
  %v977 = vld [vmem:[%s2 + $0x1d8] sm:$0xff]
  %v978 = vld [vmem:[%s2 + $0x1e0] sm:$0xff]
  %v979 = vld [vmem:[%s2 + $0x1e8] sm:$0xff]
  %v980 = vld [vmem:[%s2 + $0x1f0] sm:$0xff]
  %v981 = vld [vmem:[%s2 + $0x1f8] sm:$0xff]
  %v982 = vld [vmem:[%s2 + $0x200] sm:$0xff]
  %v983 = vld [vmem:[%s2 + $0x208] sm:$0xff]
  %v984 = vld [vmem:[%s2 + $0x210] sm:$0xff]
  %v985 = vld [vmem:[%s2 + $0x218] sm:$0xff]
  %v986 = vld [vmem:[%s2 + $0x220] sm:$0xff]
  %v987 = vld [vmem:[%s2 + $0x228] sm:$0xff]
  %v988 = vld [vmem:[%s2 + $0x230] sm:$0xff]
  %v989 = vld [vmem:[%s2 + $0x238] sm:$0xff]
  %v990 = vld [vmem:[%s2 + $0x240] sm:$0xff]
  %v991 = vld [vmem:[%s2 + $0x248] sm:$0xff]
  %v992 = vld [vmem:[%s2 + $0x250] sm:$0xff]
  %v993 = vld [vmem:[%s2 + $0x258] sm:$0xff]
  %v994 = vld [vmem:[%s2 + $0x260] sm:$0xff]
  %v995 = vld [vmem:[%s2 + $0x268] sm:$0xff]
  %v996 = vld [vmem:[%s2 + $0x270] sm:$0xff]
  %v997 = vld [vmem:[%s2 + $0x278] sm:$0xff]
  %v998 = vld [vmem:[%s2 + $0x280] sm:$0xff]
  %v999 = vld [vmem:[%s2 + $0x288] sm:$0xff]
  %v1000 = vld [vmem:[%s2 + $0x290] sm:$0xff]
  %v1001 = vld [vmem:[%s2 + $0x298] sm:$0xff]
  %v1002 = vld [vmem:[%s2 + $0x2a0] sm:$0xff]
  %v1003 = vld [vmem:[%s2 + $0x2a8] sm:$0xff]
  %v1004 = vld [vmem:[%s2 + $0x2b0] sm:$0xff]
  %v1005 = vld [vmem:[%s2 + $0x2b8] sm:$0xff]
  %v1006 = vld [vmem:[%s2 + $0x2c0] sm:$0xff]
  %v1007 = vld [vmem:[%s2 + $0x2c8] sm:$0xff]
  %v1008 = vld [vmem:[%s2 + $0x2d0] sm:$0xff]
  %v1009 = vld [vmem:[%s2 + $0x2d8] sm:$0xff]
  %v1010 = vld [vmem:[%s2 + $0x2e0] sm:$0xff]
  %v1011 = vld [vmem:[%s2 + $0x2e8] sm:$0xff]
  %v1012 = vld [vmem:[%s2 + $0x2f0] sm:$0xff]
  %v1013 = vld [vmem:[%s2 + $0x2f8] sm:$0xff]
  %v1014 = vld [vmem:[%s2 + $0x300] sm:$0xff]
  %v1015 = vld [vmem:[%s2 + $0x308] sm:$0xff]
  %v1016 = vld [vmem:[%s2 + $0x310] sm:$0xff]
  %v1017 = vld [vmem:[%s2 + $0x318] sm:$0xff]
  %v1018 = vld [vmem:[%s2 + $0x320] sm:$0xff]
  %v1019 = vld [vmem:[%s2 + $0x328] sm:$0xff]
  %v1020 = vld [vmem:[%s2 + $0x330] sm:$0xff]
  %v1021 = vld [vmem:[%s2 + $0x338] sm:$0xff]
  %v1022 = vld [vmem:[%s2 + $0x340] sm:$0xff]
  %v1023 = vld [vmem:[%s2 + $0x348] sm:$0xff]
  %v1024 = vld [vmem:[%s2 + $0x350] sm:$0xff]
  %v1025 = vld [vmem:[%s2 + $0x358] sm:$0xff]
  %v1026 = vld [vmem:[%s2 + $0x360] sm:$0xff]
  %v1027 = vld [vmem:[%s2 + $0x368] sm:$0xff]
  %v1028 = vld [vmem:[%s2 + $0x370] sm:$0xff]
  %v1029 = vld [vmem:[%s2 + $0x378] sm:$0xff]
  %v1030 = vld [vmem:[%s2 + $0x380] sm:$0xff]
  %v1031 = vld [vmem:[%s2 + $0x388] sm:$0xff]
  %v1032 = vld [vmem:[%s2 + $0x390] sm:$0xff]
  %v1033 = vld [vmem:[%s2 + $0x398] sm:$0xff]
  %v1034 = vld [vmem:[%s2 + $0x3a0] sm:$0xff]
  %v1035 = vld [vmem:[%s2 + $0x3a8] sm:$0xff]
  %v1036 = vld [vmem:[%s2 + $0x3b0] sm:$0xff]
  %v1037 = vld [vmem:[%s2 + $0x3b8] sm:$0xff]
  %v1038 = vld [vmem:[%s2 + $0x3c0] sm:$0xff]
  %v1039 = vld [vmem:[%s2 + $0x3c8] sm:$0xff]
  %v1040 = vld [vmem:[%s2 + $0x3d0] sm:$0xff]
  %v1041 = vld [vmem:[%s2 + $0x3d8] sm:$0xff]
  %v1042 = vld [vmem:[%s2 + $0x3e0] sm:$0xff]
  %v1043 = vld [vmem:[%s2 + $0x3e8] sm:$0xff]
  %v1044 = vld [vmem:[%s2 + $0x3f0] sm:$0xff]
  %v1045 = vld [vmem:[%s2 + $0x3f8] sm:$0xff]
  %v1046 = vld [vmem:[%s2 + $0x400] sm:$0xff]
  %v1047 = vld [vmem:[%s2 + $0x408] sm:$0xff]
  %v1048 = vld [vmem:[%s2 + $0x410] sm:$0xff]
  %v1049 = vld [vmem:[%s2 + $0x418] sm:$0xff]
  %v1050 = vld [vmem:[%s2 + $0x420] sm:$0xff]
  %v1051 = vld [vmem:[%s2 + $0x428] sm:$0xff]
  %v1052 = vld [vmem:[%s2 + $0x430] sm:$0xff]
  %v1053 = vld [vmem:[%s2 + $0x438] sm:$0xff]
  %v1054 = vld [vmem:[%s2 + $0x440] sm:$0xff]
  %v1055 = vld [vmem:[%s2 + $0x448] sm:$0xff]
  %v1056 = vld [vmem:[%s2 + $0x450] sm:$0xff]
  %v1057 = vld [vmem:[%s2 + $0x458] sm:$0xff]
  %v1058 = vld [vmem:[%s2 + $0x460] sm:$0xff]
  %v1059 = vld [vmem:[%s2 + $0x468] sm:$0xff]
  %v1060 = vld [vmem:[%s2 + $0x470] sm:$0xff]
  %v1061 = vld [vmem:[%s2 + $0x478] sm:$0xff]
  %v1062 = vld [vmem:[%s2 + $0x480] sm:$0xff]
  %v1063 = vld [vmem:[%s2 + $0x488] sm:$0xff]
  %v1064 = vld [vmem:[%s2 + $0x490] sm:$0xff]
  %v1065 = vld [vmem:[%s2 + $0x498] sm:$0xff]
  %v1066 = vld [vmem:[%s2 + $0x4a0] sm:$0xff]
  %v1067 = vld [vmem:[%s2 + $0x4a8] sm:$0xff]
  %v1068 = vld [vmem:[%s2 + $0x4b0] sm:$0xff]
  %v1069 = vld [vmem:[%s2 + $0x4b8] sm:$0xff]
  %v1070 = vld [vmem:[%s2 + $0x4c0] sm:$0xff]
  %v1071 = vld [vmem:[%s2 + $0x4c8] sm:$0xff]
  %v1072 = vld [vmem:[%s2 + $0x4d0] sm:$0xff]
  %v1073 = vld [vmem:[%s2 + $0x4d8] sm:$0xff]
  %v1074 = vld [vmem:[%s2 + $0x4e0] sm:$0xff]
  %v1075 = vld [vmem:[%s2 + $0x4e8] sm:$0xff]
  %v1076 = vld [vmem:[%s2 + $0x4f0] sm:$0xff]
  %v1077 = vld [vmem:[%s2 + $0x4f8] sm:$0xff]
  %v1078 = vld [vmem:[%s2 + $0x500] sm:$0xff]
  %v1079 = vld [vmem:[%s2 + $0x508] sm:$0xff]
  %v1080 = vld [vmem:[%s2 + $0x510] sm:$0xff]
  %v1081 = vld [vmem:[%s2 + $0x518] sm:$0xff]
  %v1082 = vld [vmem:[%s2 + $0x520] sm:$0xff]
  %v1083 = vld [vmem:[%s2 + $0x528] sm:$0xff]
  %v1084 = vld [vmem:[%s2 + $0x530] sm:$0xff]
  %v1085 = vld [vmem:[%s2 + $0x538] sm:$0xff]
  %v1086 = vld [vmem:[%s2 + $0x540] sm:$0xff]
  %v1087 = vld [vmem:[%s2 + $0x548] sm:$0xff]
  %v1088 = vld [vmem:[%s2 + $0x550] sm:$0xff]
  %v1089 = vld [vmem:[%s2 + $0x558] sm:$0xff]
  %v1090 = vld [vmem:[%s2 + $0x560] sm:$0xff]
  %v1091 = vld [vmem:[%s2 + $0x568] sm:$0xff]
  %v1092 = vld [vmem:[%s2 + $0x570] sm:$0xff]
  %v1093 = vld [vmem:[%s2 + $0x578] sm:$0xff]
  %v1094 = vld [vmem:[%s2 + $0x580] sm:$0xff]
  %v1095 = vld [vmem:[%s2 + $0x588] sm:$0xff]
  %v1096 = vld [vmem:[%s2 + $0x590] sm:$0xff]
  %v1097 = vld [vmem:[%s2 + $0x598] sm:$0xff]
  %v1098 = vld [vmem:[%s2 + $0x5a0] sm:$0xff]
  %v1099 = vld [vmem:[%s2 + $0x5a8] sm:$0xff]
  %v1100 = vld [vmem:[%s2 + $0x5b0] sm:$0xff]
  %v1101 = vld [vmem:[%s2 + $0x5b8] sm:$0xff]
  %v1102 = vld [vmem:[%s2 + $0x5c0] sm:$0xff]
  %v1103 = vld [vmem:[%s2 + $0x5c8] sm:$0xff]
  %v1104 = vld [vmem:[%s2 + $0x5d0] sm:$0xff]
  %v1105 = vld [vmem:[%s2 + $0x5d8] sm:$0xff]
  %v1106 = vld [vmem:[%s2 + $0x5e0] sm:$0xff]
  %v1107 = vld [vmem:[%s2 + $0x5e8] sm:$0xff]
  %v1108 = vld [vmem:[%s2 + $0x5f0] sm:$0xff]
  %v1109 = vld [vmem:[%s2 + $0x5f8] sm:$0xff]
  %v1110 = vld [vmem:[%s2 + $0x600] sm:$0xff]
  %v1111 = vld [vmem:[%s2 + $0x608] sm:$0xff]
  %v1112 = vld [vmem:[%s2 + $0x610] sm:$0xff]
  %v1113 = vld [vmem:[%s2 + $0x618] sm:$0xff]
  %v1114 = vld [vmem:[%s2 + $0x620] sm:$0xff]
  %v1115 = vld [vmem:[%s2 + $0x628] sm:$0xff]
  %v1116 = vld [vmem:[%s2 + $0x630] sm:$0xff]
  %v1117 = vld [vmem:[%s2 + $0x638] sm:$0xff]
  %v1118 = vld [vmem:[%s2 + $0x640] sm:$0xff]
  %v1119 = vld [vmem:[%s2 + $0x648] sm:$0xff]
  %v1120 = vld [vmem:[%s2 + $0x650] sm:$0xff]
  %v1121 = vld [vmem:[%s2 + $0x658] sm:$0xff]
  %v1122 = vld [vmem:[%s2 + $0x660] sm:$0xff]
  %v1123 = vld [vmem:[%s2 + $0x668] sm:$0xff]
  %v1124 = vld [vmem:[%s2 + $0x670] sm:$0xff]
  %v1125 = vld [vmem:[%s2 + $0x678] sm:$0xff]
  %v1126 = vld [vmem:[%s2 + $0x680] sm:$0xff]
  %v1127 = vld [vmem:[%s2 + $0x688] sm:$0xff]
  %v1128 = vld [vmem:[%s2 + $0x690] sm:$0xff]
  %v1129 = vld [vmem:[%s2 + $0x698] sm:$0xff]
  %v1130 = vld [vmem:[%s2 + $0x6a0] sm:$0xff]
  %v1131 = vld [vmem:[%s2 + $0x6a8] sm:$0xff]
  %v1132 = vld [vmem:[%s2 + $0x6b0] sm:$0xff]
  %v1133 = vld [vmem:[%s2 + $0x6b8] sm:$0xff]
  %v1134 = vld [vmem:[%s2 + $0x6c0] sm:$0xff]
  %v1135 = vld [vmem:[%s2 + $0x6c8] sm:$0xff]
  %v1136 = vld [vmem:[%s2 + $0x6d0] sm:$0xff]
  %v1137 = vld [vmem:[%s2 + $0x6d8] sm:$0xff]
  %v1138 = vld [vmem:[%s2 + $0x6e0] sm:$0xff]
  %v1139 = vld [vmem:[%s2 + $0x6e8] sm:$0xff]
  %v1140 = vld [vmem:[%s2 + $0x6f0] sm:$0xff]
  %v1141 = vld [vmem:[%s2 + $0x6f8] sm:$0xff]
  %v1142 = vld [vmem:[%s2 + $0x700] sm:$0xff]
  %v1143 = vld [vmem:[%s2 + $0x708] sm:$0xff]
  %v1144 = vld [vmem:[%s2 + $0x710] sm:$0xff]
  %v1145 = vld [vmem:[%s2 + $0x718] sm:$0xff]
  %v1146 = vld [vmem:[%s2 + $0x720] sm:$0xff]
  %v1147 = vld [vmem:[%s2 + $0x728] sm:$0xff]
  %v1148 = vld [vmem:[%s2 + $0x730] sm:$0xff]
  %v1149 = vld [vmem:[%s2 + $0x738] sm:$0xff]
  %v1150 = vld [vmem:[%s2 + $0x740] sm:$0xff]
  %v1151 = vld [vmem:[%s2 + $0x748] sm:$0xff]
  %v1152 = vld [vmem:[%s2 + $0x750] sm:$0xff]
  %v1153 = vld [vmem:[%s2 + $0x758] sm:$0xff]
  %v1154 = vld [vmem:[%s2 + $0x760] sm:$0xff]
  %v1155 = vld [vmem:[%s2 + $0x768] sm:$0xff]
  %v1156 = vld [vmem:[%s2 + $0x770] sm:$0xff]
  %v1157 = vld [vmem:[%s2 + $0x778] sm:$0xff]
  %v1158 = vld [vmem:[%s2 + $0x780] sm:$0xff]
  %v1159 = vld [vmem:[%s2 + $0x788] sm:$0xff]
  %v1160 = vld [vmem:[%s2 + $0x790] sm:$0xff]
  %v1161 = vld [vmem:[%s2 + $0x798] sm:$0xff]
  %v1162 = vld [vmem:[%s2 + $0x7a0] sm:$0xff]
  %v1163 = vld [vmem:[%s2 + $0x7a8] sm:$0xff]
  %v1164 = vld [vmem:[%s2 + $0x7b0] sm:$0xff]
  %v1165 = vld [vmem:[%s2 + $0x7b8] sm:$0xff]
  %v1166 = vld [vmem:[%s2 + $0x7c0] sm:$0xff]
  %v1167 = vld [vmem:[%s2 + $0x7c8] sm:$0xff]
  %v1168 = vld [vmem:[%s2 + $0x7d0] sm:$0xff]
  %v1169 = vld [vmem:[%s2 + $0x7d8] sm:$0xff]
  %v1170 = vld [vmem:[%s2 + $0x7e0] sm:$0xff]
  %v1171 = vld [vmem:[%s2 + $0x7e8] sm:$0xff]
  %v1172 = vld [vmem:[%s2 + $0x7f0] sm:$0xff]
  %v1173 = vld [vmem:[%s2 + $0x7f8] sm:$0xff]
  %v1174 = vld [vmem:[%s2 + $0x800] sm:$0xff]
  %v1175 = vld [vmem:[%s2 + $0x808] sm:$0xff]
  %v1176 = vld [vmem:[%s2 + $0x810] sm:$0xff]
  %v1177 = vld [vmem:[%s2 + $0x818] sm:$0xff]
  %v1178 = vld [vmem:[%s2 + $0x820] sm:$0xff]
  %v1179 = vld [vmem:[%s2 + $0x828] sm:$0xff]
  %v1180 = vld [vmem:[%s2 + $0x830] sm:$0xff]
  %v1181 = vld [vmem:[%s2 + $0x838] sm:$0xff]
  %v1182 = vld [vmem:[%s2 + $0x840] sm:$0xff]
  %v1183 = vld [vmem:[%s2 + $0x848] sm:$0xff]
  %v1184 = vld [vmem:[%s2 + $0x850] sm:$0xff]
  %v1185 = vld [vmem:[%s2 + $0x858] sm:$0xff]
  %v1186 = vld [vmem:[%s2 + $0x860] sm:$0xff]
  %v1187 = vld [vmem:[%s2 + $0x868] sm:$0xff]
  %v1188 = vld [vmem:[%s2 + $0x870] sm:$0xff]
  %v1189 = vld [vmem:[%s2 + $0x878] sm:$0xff]
  %v1190 = vld [vmem:[%s2 + $0x880] sm:$0xff]
  %v1191 = vld [vmem:[%s2 + $0x888] sm:$0xff]
  %v1192 = vld [vmem:[%s2 + $0x890] sm:$0xff]
  %v1193 = vld [vmem:[%s2 + $0x898] sm:$0xff]
  %v1194 = vld [vmem:[%s2 + $0x8a0] sm:$0xff]
  %v1195 = vld [vmem:[%s2 + $0x8a8] sm:$0xff]
  %v1196 = vld [vmem:[%s2 + $0x8b0] sm:$0xff]
  %v1197 = vld [vmem:[%s2 + $0x8b8] sm:$0xff]
  %v1198 = vld [vmem:[%s2 + $0x8c0] sm:$0xff]
  %v1199 = vld [vmem:[%s2 + $0x8c8] sm:$0xff]
  %v1200 = vld [vmem:[%s2 + $0x8d0] sm:$0xff]
  %v1201 = vld [vmem:[%s2 + $0x8d8] sm:$0xff]
  %v1202 = vld [vmem:[%s2 + $0x8e0] sm:$0xff]
  %v1203 = vld [vmem:[%s2 + $0x8e8] sm:$0xff]
  %v1204 = vld [vmem:[%s2 + $0x8f0] sm:$0xff]
  %v1205 = vld [vmem:[%s2 + $0x8f8] sm:$0xff]
  %v1254 = vunpack.c.l.b16 %v870
  %v1255 = vunpack.c.l.b16 %v871
  %v1256 = vunpack.c.l.b16 %v872
  %v1257 = vunpack.c.l.b16 %v873
  %v1258 = vunpack.c.l.b16 %v874
  %v1259 = vunpack.c.l.b16 %v875
  %v1260 = vunpack.c.l.b16 %v876
  %v1261 = vunpack.c.l.b16 %v877
  %v1262 = vunpack.c.l.b16 %v878
  %v1263 = vunpack.c.l.b16 %v879
  %v1264 = vunpack.c.l.b16 %v880
  %v1265 = vunpack.c.l.b16 %v881
  %v1266 = vunpack.c.l.b16 %v882
  %v1267 = vunpack.c.l.b16 %v883
  %v1268 = vunpack.c.l.b16 %v884
  %v1269 = vunpack.c.l.b16 %v885
  %v1270 = vunpack.c.l.b16 %v886
  %v1271 = vunpack.c.l.b16 %v887
  %v1272 = vunpack.c.l.b16 %v888
  %v1273 = vunpack.c.l.b16 %v889
  %v1274 = vunpack.c.l.b16 %v890
  %v1275 = vunpack.c.l.b16 %v891
  %v1276 = vunpack.c.l.b16 %v892
  %v1277 = vunpack.c.l.b16 %v893
  %v1278 = vunpack.c.l.b16 %v894
  %v1279 = vunpack.c.l.b16 %v895
  %v1280 = vunpack.c.l.b16 %v896
  %v1281 = vunpack.c.l.b16 %v897
  %v1282 = vunpack.c.l.b16 %v898
  %v1283 = vunpack.c.l.b16 %v899
  %v1284 = vunpack.c.l.b16 %v900
  %v1285 = vunpack.c.l.b16 %v901
  %v1286 = vunpack.c.l.b16 %v902
  %v1287 = vunpack.c.l.b16 %v903
  %v1288 = vunpack.c.l.b16 %v904
  %v1289 = vunpack.c.l.b16 %v905
  %v1290 = vunpack.c.l.b16 %v906
  %v1291 = vunpack.c.l.b16 %v907
  %v1292 = vunpack.c.l.b16 %v908
  %v1293 = vunpack.c.l.b16 %v909
  %v1294 = vunpack.c.l.b16 %v910
  %v1295 = vunpack.c.l.b16 %v911
  %v1296 = vunpack.c.l.b16 %v912
  %v1297 = vunpack.c.l.b16 %v913
  %v1298 = vunpack.c.l.b16 %v914
  %v1299 = vunpack.c.l.b16 %v915
  %v1300 = vunpack.c.l.b16 %v916
  %v1301 = vunpack.c.l.b16 %v917
  %vm1302 = vcmask 1041409
  %v1303 = vsel %vm1302, %v1260, %v1254
  %vm1304 = vcmask 1042434
  %v1305 = vsel %vm1304, %v1266, %v1303
  %vm1306 = vcmask 1043459
  %v1307 = vsel %vm1306, %v1272, %v1305
  %vm1308 = vcmask 1044484
  %v1309 = vsel %vm1308, %v1278, %v1307
  %vm1310 = vcmask 1045509
  %v1311 = vsel %vm1310, %v1284, %v1309
  %vm1312 = vcmask 1046534
  %v1313 = vsel %vm1312, %v1290, %v1311
  %vm1314 = vcmask 1047559
  %v1315 = vsel %vm1314, %v1296, %v1313
  %v1316 = vsel %vm1302, %v1261, %v1255
  %v1317 = vsel %vm1304, %v1267, %v1316
  %v1318 = vsel %vm1306, %v1273, %v1317
  %v1319 = vsel %vm1308, %v1279, %v1318
  %v1320 = vsel %vm1310, %v1285, %v1319
  %v1321 = vsel %vm1312, %v1291, %v1320
  %v1322 = vsel %vm1314, %v1297, %v1321
  %v1323 = vsel %vm1302, %v1262, %v1256
  %v1324 = vsel %vm1304, %v1268, %v1323
  %v1325 = vsel %vm1306, %v1274, %v1324
  %v1326 = vsel %vm1308, %v1280, %v1325
  %v1327 = vsel %vm1310, %v1286, %v1326
  %v1328 = vsel %vm1312, %v1292, %v1327
  %v1329 = vsel %vm1314, %v1298, %v1328
  %v1330 = vsel %vm1302, %v1263, %v1257
  %v1331 = vsel %vm1304, %v1269, %v1330
  %v1332 = vsel %vm1306, %v1275, %v1331
  %v1333 = vsel %vm1308, %v1281, %v1332
  %v1334 = vsel %vm1310, %v1287, %v1333
  %v1335 = vsel %vm1312, %v1293, %v1334
  %v1336 = vsel %vm1314, %v1299, %v1335
  %v1337 = vsel %vm1302, %v1264, %v1258
  %v1338 = vsel %vm1304, %v1270, %v1337
  %v1339 = vsel %vm1306, %v1276, %v1338
  %v1340 = vsel %vm1308, %v1282, %v1339
  %v1341 = vsel %vm1310, %v1288, %v1340
  %v1342 = vsel %vm1312, %v1294, %v1341
  %v1343 = vsel %vm1314, %v1300, %v1342
  %v1344 = vsel %vm1302, %v1265, %v1259
  %v1345 = vsel %vm1304, %v1271, %v1344
  %v1346 = vsel %vm1306, %v1277, %v1345
  %v1347 = vsel %vm1308, %v1283, %v1346
  %v1348 = vsel %vm1310, %v1289, %v1347
  %v1349 = vsel %vm1312, %v1295, %v1348
  %v1350 = vsel %vm1314, %v1301, %v1349
  %v1351 = vpack.c.b16 %v1315, %v1315
  %v1352 = vpack.c.b16 %v1322, %v1322
  %v1353 = vpack.c.b16 %v1329, %v1329
  %v1354 = vpack.c.b16 %v1336, %v1336
  %v1355 = vpack.c.b16 %v1343, %v1343
  %v1356 = vpack.c.b16 %v1350, %v1350
  %v1651 = vunpack.c.l.b16 %v918
  %v1652 = vunpack.c.h.b16 %v918
  %v1653 = vunpack.c.l.b16 %v919
  %v1654 = vunpack.c.h.b16 %v919
  %v1655 = vunpack.c.l.b16 %v920
  %v1656 = vunpack.c.h.b16 %v920
  %v1657 = vunpack.c.l.b16 %v921
  %v1658 = vunpack.c.h.b16 %v921
  %v1659 = vunpack.c.l.b16 %v922
  %v1660 = vunpack.c.h.b16 %v922
  %v1661 = vunpack.c.l.b16 %v923
  %v1662 = vunpack.c.h.b16 %v923
  %v1663 = vunpack.c.l.b16 %v924
  %v1664 = vunpack.c.h.b16 %v924
  %v1665 = vunpack.c.l.b16 %v925
  %v1666 = vunpack.c.h.b16 %v925
  %v1667 = vunpack.c.l.b16 %v926
  %v1668 = vunpack.c.h.b16 %v926
  %v1669 = vunpack.c.l.b16 %v927
  %v1670 = vunpack.c.h.b16 %v927
  %v1671 = vunpack.c.l.b16 %v928
  %v1672 = vunpack.c.h.b16 %v928
  %v1673 = vunpack.c.l.b16 %v929
  %v1674 = vunpack.c.h.b16 %v929
  %v1675 = vunpack.c.l.b16 %v930
  %v1676 = vunpack.c.h.b16 %v930
  %v1677 = vunpack.c.l.b16 %v931
  %v1678 = vunpack.c.h.b16 %v931
  %v1679 = vunpack.c.l.b16 %v932
  %v1680 = vunpack.c.h.b16 %v932
  %v1681 = vunpack.c.l.b16 %v933
  %v1682 = vunpack.c.h.b16 %v933
  %v1683 = vunpack.c.l.b16 %v934
  %v1684 = vunpack.c.h.b16 %v934
  %v1685 = vunpack.c.l.b16 %v935
  %v1686 = vunpack.c.h.b16 %v935
  %v1687 = vunpack.c.l.b16 %v936
  %v1688 = vunpack.c.h.b16 %v936
  %v1689 = vunpack.c.l.b16 %v937
  %v1690 = vunpack.c.h.b16 %v937
  %v1691 = vunpack.c.l.b16 %v938
  %v1692 = vunpack.c.h.b16 %v938
  %v1693 = vunpack.c.l.b16 %v939
  %v1694 = vunpack.c.h.b16 %v939
  %v1695 = vunpack.c.l.b16 %v940
  %v1696 = vunpack.c.h.b16 %v940
  %v1697 = vunpack.c.l.b16 %v941
  %v1698 = vunpack.c.h.b16 %v941
  %v1699 = vunpack.c.l.b16 %v942
  %v1700 = vunpack.c.h.b16 %v942
  %v1701 = vunpack.c.l.b16 %v943
  %v1702 = vunpack.c.h.b16 %v943
  %v1703 = vunpack.c.l.b16 %v944
  %v1704 = vunpack.c.h.b16 %v944
  %v1705 = vunpack.c.l.b16 %v945
  %v1706 = vunpack.c.h.b16 %v945
  %v1707 = vunpack.c.l.b16 %v946
  %v1708 = vunpack.c.h.b16 %v946
  %v1709 = vunpack.c.l.b16 %v947
  %v1710 = vunpack.c.h.b16 %v947
  %v1711 = vunpack.c.l.b16 %v948
  %v1712 = vunpack.c.h.b16 %v948
  %v1713 = vunpack.c.l.b16 %v949
  %v1714 = vunpack.c.h.b16 %v949
  %v1715 = vunpack.c.l.b16 %v950
  %v1716 = vunpack.c.h.b16 %v950
  %v1717 = vunpack.c.l.b16 %v951
  %v1718 = vunpack.c.h.b16 %v951
  %v1719 = vunpack.c.l.b16 %v952
  %v1720 = vunpack.c.h.b16 %v952
  %v1721 = vunpack.c.l.b16 %v953
  %v1722 = vunpack.c.h.b16 %v953
  %v1723 = vunpack.c.l.b16 %v954
  %v1724 = vunpack.c.h.b16 %v954
  %v1725 = vunpack.c.l.b16 %v955
  %v1726 = vunpack.c.h.b16 %v955
  %v1727 = vunpack.c.l.b16 %v956
  %v1728 = vunpack.c.h.b16 %v956
  %v1729 = vunpack.c.l.b16 %v957
  %v1730 = vunpack.c.h.b16 %v957
  %v1731 = vunpack.c.l.b16 %v958
  %v1732 = vunpack.c.h.b16 %v958
  %v1733 = vunpack.c.l.b16 %v959
  %v1734 = vunpack.c.h.b16 %v959
  %v1735 = vunpack.c.l.b16 %v960
  %v1736 = vunpack.c.h.b16 %v960
  %v1737 = vunpack.c.l.b16 %v961
  %v1738 = vunpack.c.h.b16 %v961
  %v1739 = vunpack.c.l.b16 %v962
  %v1740 = vunpack.c.h.b16 %v962
  %v1741 = vunpack.c.l.b16 %v963
  %v1742 = vunpack.c.h.b16 %v963
  %v1743 = vunpack.c.l.b16 %v964
  %v1744 = vunpack.c.h.b16 %v964
  %v1745 = vunpack.c.l.b16 %v965
  %v1746 = vunpack.c.h.b16 %v965
  %v1747 = vunpack.c.l.b16 %v966
  %v1748 = vunpack.c.h.b16 %v966
  %v1749 = vunpack.c.l.b16 %v967
  %v1750 = vunpack.c.h.b16 %v967
  %v1751 = vunpack.c.l.b16 %v968
  %v1752 = vunpack.c.h.b16 %v968
  %v1753 = vunpack.c.l.b16 %v969
  %v1754 = vunpack.c.h.b16 %v969
  %v1755 = vunpack.c.l.b16 %v970
  %v1756 = vunpack.c.h.b16 %v970
  %v1757 = vunpack.c.l.b16 %v971
  %v1758 = vunpack.c.h.b16 %v971
  %v1759 = vunpack.c.l.b16 %v972
  %v1760 = vunpack.c.h.b16 %v972
  %v1761 = vunpack.c.l.b16 %v973
  %v1762 = vunpack.c.h.b16 %v973
  %v1763 = vunpack.c.l.b16 %v974
  %v1764 = vunpack.c.h.b16 %v974
  %v1765 = vunpack.c.l.b16 %v975
  %v1766 = vunpack.c.h.b16 %v975
  %v1767 = vunpack.c.l.b16 %v976
  %v1768 = vunpack.c.h.b16 %v976
  %v1769 = vunpack.c.l.b16 %v977
  %v1770 = vunpack.c.h.b16 %v977
  %v1771 = vunpack.c.l.b16 %v978
  %v1772 = vunpack.c.h.b16 %v978
  %v1773 = vunpack.c.l.b16 %v979
  %v1774 = vunpack.c.h.b16 %v979
  %v1775 = vunpack.c.l.b16 %v980
  %v1776 = vunpack.c.h.b16 %v980
  %v1777 = vunpack.c.l.b16 %v981
  %v1778 = vunpack.c.h.b16 %v981
  %v1779 = vunpack.c.l.b16 %v982
  %v1780 = vunpack.c.h.b16 %v982
  %v1781 = vunpack.c.l.b16 %v983
  %v1782 = vunpack.c.h.b16 %v983
  %v1783 = vunpack.c.l.b16 %v984
  %v1784 = vunpack.c.h.b16 %v984
  %v1785 = vunpack.c.l.b16 %v985
  %v1786 = vunpack.c.h.b16 %v985
  %v1787 = vunpack.c.l.b16 %v986
  %v1788 = vunpack.c.h.b16 %v986
  %v1789 = vunpack.c.l.b16 %v987
  %v1790 = vunpack.c.h.b16 %v987
  %v1791 = vunpack.c.l.b16 %v988
  %v1792 = vunpack.c.h.b16 %v988
  %v1793 = vunpack.c.l.b16 %v989
  %v1794 = vunpack.c.h.b16 %v989
  %v1795 = vunpack.c.l.b16 %v990
  %v1796 = vunpack.c.h.b16 %v990
  %v1797 = vunpack.c.l.b16 %v991
  %v1798 = vunpack.c.h.b16 %v991
  %v1799 = vunpack.c.l.b16 %v992
  %v1800 = vunpack.c.h.b16 %v992
  %v1801 = vunpack.c.l.b16 %v993
  %v1802 = vunpack.c.h.b16 %v993
  %v1803 = vunpack.c.l.b16 %v994
  %v1804 = vunpack.c.h.b16 %v994
  %v1805 = vunpack.c.l.b16 %v995
  %v1806 = vunpack.c.h.b16 %v995
  %v1807 = vunpack.c.l.b16 %v996
  %v1808 = vunpack.c.h.b16 %v996
  %v1809 = vunpack.c.l.b16 %v997
  %v1810 = vunpack.c.h.b16 %v997
  %v1811 = vunpack.c.l.b16 %v998
  %v1812 = vunpack.c.h.b16 %v998
  %v1813 = vunpack.c.l.b16 %v999
  %v1814 = vunpack.c.h.b16 %v999
  %v1815 = vunpack.c.l.b16 %v1000
  %v1816 = vunpack.c.h.b16 %v1000
  %v1817 = vunpack.c.l.b16 %v1001
  %v1818 = vunpack.c.h.b16 %v1001
  %v1819 = vunpack.c.l.b16 %v1002
  %v1820 = vunpack.c.h.b16 %v1002
  %v1821 = vunpack.c.l.b16 %v1003
  %v1822 = vunpack.c.h.b16 %v1003
  %v1823 = vunpack.c.l.b16 %v1004
  %v1824 = vunpack.c.h.b16 %v1004
  %v1825 = vunpack.c.l.b16 %v1005
  %v1826 = vunpack.c.h.b16 %v1005
  %v1827 = vunpack.c.l.b16 %v1006
  %v1828 = vunpack.c.h.b16 %v1006
  %v1829 = vunpack.c.l.b16 %v1007
  %v1830 = vunpack.c.h.b16 %v1007
  %v1831 = vunpack.c.l.b16 %v1008
  %v1832 = vunpack.c.h.b16 %v1008
  %v1833 = vunpack.c.l.b16 %v1009
  %v1834 = vunpack.c.h.b16 %v1009
  %v1835 = vunpack.c.l.b16 %v1010
  %v1836 = vunpack.c.h.b16 %v1010
  %v1837 = vunpack.c.l.b16 %v1011
  %v1838 = vunpack.c.h.b16 %v1011
  %v1839 = vunpack.c.l.b16 %v1012
  %v1840 = vunpack.c.h.b16 %v1012
  %v1841 = vunpack.c.l.b16 %v1013
  %v1842 = vunpack.c.h.b16 %v1013
  %v1843 = vunpack.c.l.b16 %v1014
  %v1844 = vunpack.c.h.b16 %v1014
  %v1845 = vunpack.c.l.b16 %v1015
  %v1846 = vunpack.c.h.b16 %v1015
  %v1847 = vunpack.c.l.b16 %v1016
  %v1848 = vunpack.c.h.b16 %v1016
  %v1849 = vunpack.c.l.b16 %v1017
  %v1850 = vunpack.c.h.b16 %v1017
  %v1851 = vunpack.c.l.b16 %v1018
  %v1852 = vunpack.c.h.b16 %v1018
  %v1853 = vunpack.c.l.b16 %v1019
  %v1854 = vunpack.c.h.b16 %v1019
  %v1855 = vunpack.c.l.b16 %v1020
  %v1856 = vunpack.c.h.b16 %v1020
  %v1857 = vunpack.c.l.b16 %v1021
  %v1858 = vunpack.c.h.b16 %v1021
  %v1859 = vunpack.c.l.b16 %v1022
  %v1860 = vunpack.c.h.b16 %v1022
  %v1861 = vunpack.c.l.b16 %v1023
  %v1862 = vunpack.c.h.b16 %v1023
  %v1863 = vunpack.c.l.b16 %v1024
  %v1864 = vunpack.c.h.b16 %v1024
  %v1865 = vunpack.c.l.b16 %v1025
  %v1866 = vunpack.c.h.b16 %v1025
  %v1867 = vunpack.c.l.b16 %v1026
  %v1868 = vunpack.c.h.b16 %v1026
  %v1869 = vunpack.c.l.b16 %v1027
  %v1870 = vunpack.c.h.b16 %v1027
  %v1871 = vunpack.c.l.b16 %v1028
  %v1872 = vunpack.c.h.b16 %v1028
  %v1873 = vunpack.c.l.b16 %v1029
  %v1874 = vunpack.c.h.b16 %v1029
  %v1875 = vunpack.c.l.b16 %v1030
  %v1876 = vunpack.c.h.b16 %v1030
  %v1877 = vunpack.c.l.b16 %v1031
  %v1878 = vunpack.c.h.b16 %v1031
  %v1879 = vunpack.c.l.b16 %v1032
  %v1880 = vunpack.c.h.b16 %v1032
  %v1881 = vunpack.c.l.b16 %v1033
  %v1882 = vunpack.c.h.b16 %v1033
  %v1883 = vunpack.c.l.b16 %v1034
  %v1884 = vunpack.c.h.b16 %v1034
  %v1885 = vunpack.c.l.b16 %v1035
  %v1886 = vunpack.c.h.b16 %v1035
  %v1887 = vunpack.c.l.b16 %v1036
  %v1888 = vunpack.c.h.b16 %v1036
  %v1889 = vunpack.c.l.b16 %v1037
  %v1890 = vunpack.c.h.b16 %v1037
  %v1891 = vunpack.c.l.b16 %v1038
  %v1892 = vunpack.c.h.b16 %v1038
  %v1893 = vunpack.c.l.b16 %v1039
  %v1894 = vunpack.c.h.b16 %v1039
  %v1895 = vunpack.c.l.b16 %v1040
  %v1896 = vunpack.c.h.b16 %v1040
  %v1897 = vunpack.c.l.b16 %v1041
  %v1898 = vunpack.c.h.b16 %v1041
  %v1899 = vunpack.c.l.b16 %v1042
  %v1900 = vunpack.c.h.b16 %v1042
  %v1901 = vunpack.c.l.b16 %v1043
  %v1902 = vunpack.c.h.b16 %v1043
  %v1903 = vunpack.c.l.b16 %v1044
  %v1904 = vunpack.c.h.b16 %v1044
  %v1905 = vunpack.c.l.b16 %v1045
  %v1906 = vunpack.c.h.b16 %v1045
  %v1907 = vunpack.c.l.b16 %v1046
  %v1908 = vunpack.c.h.b16 %v1046
  %v1909 = vunpack.c.l.b16 %v1047
  %v1910 = vunpack.c.h.b16 %v1047
  %v1911 = vunpack.c.l.b16 %v1048
  %v1912 = vunpack.c.h.b16 %v1048
  %v1913 = vunpack.c.l.b16 %v1049
  %v1914 = vunpack.c.h.b16 %v1049
  %v1915 = vunpack.c.l.b16 %v1050
  %v1916 = vunpack.c.h.b16 %v1050
  %v1917 = vunpack.c.l.b16 %v1051
  %v1918 = vunpack.c.h.b16 %v1051
  %v1919 = vunpack.c.l.b16 %v1052
  %v1920 = vunpack.c.h.b16 %v1052
  %v1921 = vunpack.c.l.b16 %v1053
  %v1922 = vunpack.c.h.b16 %v1053
  %v1923 = vunpack.c.l.b16 %v1054
  %v1924 = vunpack.c.h.b16 %v1054
  %v1925 = vunpack.c.l.b16 %v1055
  %v1926 = vunpack.c.h.b16 %v1055
  %v1927 = vunpack.c.l.b16 %v1056
  %v1928 = vunpack.c.h.b16 %v1056
  %v1929 = vunpack.c.l.b16 %v1057
  %v1930 = vunpack.c.h.b16 %v1057
  %v1931 = vunpack.c.l.b16 %v1058
  %v1932 = vunpack.c.h.b16 %v1058
  %v1933 = vunpack.c.l.b16 %v1059
  %v1934 = vunpack.c.h.b16 %v1059
  %v1935 = vunpack.c.l.b16 %v1060
  %v1936 = vunpack.c.h.b16 %v1060
  %v1937 = vunpack.c.l.b16 %v1061
  %v1938 = vunpack.c.h.b16 %v1061
  %v1939 = vunpack.c.l.b16 %v1062
  %v1940 = vunpack.c.h.b16 %v1062
  %v1941 = vunpack.c.l.b16 %v1063
  %v1942 = vunpack.c.h.b16 %v1063
  %v1943 = vunpack.c.l.b16 %v1064
  %v1944 = vunpack.c.h.b16 %v1064
  %v1945 = vunpack.c.l.b16 %v1065
  %v1946 = vunpack.c.h.b16 %v1065
  %v1947 = vunpack.c.l.b16 %v1066
  %v1948 = vunpack.c.h.b16 %v1066
  %v1949 = vunpack.c.l.b16 %v1067
  %v1950 = vunpack.c.h.b16 %v1067
  %v1951 = vunpack.c.l.b16 %v1068
  %v1952 = vunpack.c.h.b16 %v1068
  %v1953 = vunpack.c.l.b16 %v1069
  %v1954 = vunpack.c.h.b16 %v1069
  %v1955 = vunpack.c.l.b16 %v1070
  %v1956 = vunpack.c.h.b16 %v1070
  %v1957 = vunpack.c.l.b16 %v1071
  %v1958 = vunpack.c.h.b16 %v1071
  %v1959 = vunpack.c.l.b16 %v1072
  %v1960 = vunpack.c.h.b16 %v1072
  %v1961 = vunpack.c.l.b16 %v1073
  %v1962 = vunpack.c.h.b16 %v1073
  %v1963 = vunpack.c.l.b16 %v1074
  %v1964 = vunpack.c.h.b16 %v1074
  %v1965 = vunpack.c.l.b16 %v1075
  %v1966 = vunpack.c.h.b16 %v1075
  %v1967 = vunpack.c.l.b16 %v1076
  %v1968 = vunpack.c.h.b16 %v1076
  %v1969 = vunpack.c.l.b16 %v1077
  %v1970 = vunpack.c.h.b16 %v1077
  %v1971 = vunpack.c.l.b16 %v1078
  %v1972 = vunpack.c.h.b16 %v1078
  %v1973 = vunpack.c.l.b16 %v1079
  %v1974 = vunpack.c.h.b16 %v1079
  %v1975 = vunpack.c.l.b16 %v1080
  %v1976 = vunpack.c.h.b16 %v1080
  %v1977 = vunpack.c.l.b16 %v1081
  %v1978 = vunpack.c.h.b16 %v1081
  %v1979 = vunpack.c.l.b16 %v1082
  %v1980 = vunpack.c.h.b16 %v1082
  %v1981 = vunpack.c.l.b16 %v1083
  %v1982 = vunpack.c.h.b16 %v1083
  %v1983 = vunpack.c.l.b16 %v1084
  %v1984 = vunpack.c.h.b16 %v1084
  %v1985 = vunpack.c.l.b16 %v1085
  %v1986 = vunpack.c.h.b16 %v1085
  %v1987 = vunpack.c.l.b16 %v1086
  %v1988 = vunpack.c.h.b16 %v1086
  %v1989 = vunpack.c.l.b16 %v1087
  %v1990 = vunpack.c.h.b16 %v1087
  %v1991 = vunpack.c.l.b16 %v1088
  %v1992 = vunpack.c.h.b16 %v1088
  %v1993 = vunpack.c.l.b16 %v1089
  %v1994 = vunpack.c.h.b16 %v1089
  %v1995 = vunpack.c.l.b16 %v1090
  %v1996 = vunpack.c.h.b16 %v1090
  %v1997 = vunpack.c.l.b16 %v1091
  %v1998 = vunpack.c.h.b16 %v1091
  %v1999 = vunpack.c.l.b16 %v1092
  %v2000 = vunpack.c.h.b16 %v1092
  %v2001 = vunpack.c.l.b16 %v1093
  %v2002 = vunpack.c.h.b16 %v1093
  %v2003 = vunpack.c.l.b16 %v1094
  %v2004 = vunpack.c.h.b16 %v1094
  %v2005 = vunpack.c.l.b16 %v1095
  %v2006 = vunpack.c.h.b16 %v1095
  %v2007 = vunpack.c.l.b16 %v1096
  %v2008 = vunpack.c.h.b16 %v1096
  %v2009 = vunpack.c.l.b16 %v1097
  %v2010 = vunpack.c.h.b16 %v1097
  %v2011 = vunpack.c.l.b16 %v1098
  %v2012 = vunpack.c.h.b16 %v1098
  %v2013 = vunpack.c.l.b16 %v1099
  %v2014 = vunpack.c.h.b16 %v1099
  %v2015 = vunpack.c.l.b16 %v1100
  %v2016 = vunpack.c.h.b16 %v1100
  %v2017 = vunpack.c.l.b16 %v1101
  %v2018 = vunpack.c.h.b16 %v1101
  %v2019 = vunpack.c.l.b16 %v1102
  %v2020 = vunpack.c.h.b16 %v1102
  %v2021 = vunpack.c.l.b16 %v1103
  %v2022 = vunpack.c.h.b16 %v1103
  %v2023 = vunpack.c.l.b16 %v1104
  %v2024 = vunpack.c.h.b16 %v1104
  %v2025 = vunpack.c.l.b16 %v1105
  %v2026 = vunpack.c.h.b16 %v1105
  %v2027 = vunpack.c.l.b16 %v1106
  %v2028 = vunpack.c.h.b16 %v1106
  %v2029 = vunpack.c.l.b16 %v1107
  %v2030 = vunpack.c.h.b16 %v1107
  %v2031 = vunpack.c.l.b16 %v1108
  %v2032 = vunpack.c.h.b16 %v1108
  %v2033 = vunpack.c.l.b16 %v1109
  %v2034 = vunpack.c.h.b16 %v1109
  %v2035 = vunpack.c.l.b16 %v1110
  %v2036 = vunpack.c.h.b16 %v1110
  %v2037 = vunpack.c.l.b16 %v1111
  %v2038 = vunpack.c.h.b16 %v1111
  %v2039 = vunpack.c.l.b16 %v1112
  %v2040 = vunpack.c.h.b16 %v1112
  %v2041 = vunpack.c.l.b16 %v1113
  %v2042 = vunpack.c.h.b16 %v1113
  %v2043 = vunpack.c.l.b16 %v1114
  %v2044 = vunpack.c.h.b16 %v1114
  %v2045 = vunpack.c.l.b16 %v1115
  %v2046 = vunpack.c.h.b16 %v1115
  %v2047 = vunpack.c.l.b16 %v1116
  %v2048 = vunpack.c.h.b16 %v1116
  %v2049 = vunpack.c.l.b16 %v1117
  %v2050 = vunpack.c.h.b16 %v1117
  %v2051 = vunpack.c.l.b16 %v1118
  %v2052 = vunpack.c.h.b16 %v1118
  %v2053 = vunpack.c.l.b16 %v1119
  %v2054 = vunpack.c.h.b16 %v1119
  %v2055 = vunpack.c.l.b16 %v1120
  %v2056 = vunpack.c.h.b16 %v1120
  %v2057 = vunpack.c.l.b16 %v1121
  %v2058 = vunpack.c.h.b16 %v1121
  %v2059 = vunpack.c.l.b16 %v1122
  %v2060 = vunpack.c.h.b16 %v1122
  %v2061 = vunpack.c.l.b16 %v1123
  %v2062 = vunpack.c.h.b16 %v1123
  %v2063 = vunpack.c.l.b16 %v1124
  %v2064 = vunpack.c.h.b16 %v1124
  %v2065 = vunpack.c.l.b16 %v1125
  %v2066 = vunpack.c.h.b16 %v1125
  %v2067 = vunpack.c.l.b16 %v1126
  %v2068 = vunpack.c.h.b16 %v1126
  %v2069 = vunpack.c.l.b16 %v1127
  %v2070 = vunpack.c.h.b16 %v1127
  %v2071 = vunpack.c.l.b16 %v1128
  %v2072 = vunpack.c.h.b16 %v1128
  %v2073 = vunpack.c.l.b16 %v1129
  %v2074 = vunpack.c.h.b16 %v1129
  %v2075 = vunpack.c.l.b16 %v1130
  %v2076 = vunpack.c.h.b16 %v1130
  %v2077 = vunpack.c.l.b16 %v1131
  %v2078 = vunpack.c.h.b16 %v1131
  %v2079 = vunpack.c.l.b16 %v1132
  %v2080 = vunpack.c.h.b16 %v1132
  %v2081 = vunpack.c.l.b16 %v1133
  %v2082 = vunpack.c.h.b16 %v1133
  %v2083 = vunpack.c.l.b16 %v1134
  %v2084 = vunpack.c.h.b16 %v1134
  %v2085 = vunpack.c.l.b16 %v1135
  %v2086 = vunpack.c.h.b16 %v1135
  %v2087 = vunpack.c.l.b16 %v1136
  %v2088 = vunpack.c.h.b16 %v1136
  %v2089 = vunpack.c.l.b16 %v1137
  %v2090 = vunpack.c.h.b16 %v1137
  %v2091 = vunpack.c.l.b16 %v1138
  %v2092 = vunpack.c.h.b16 %v1138
  %v2093 = vunpack.c.l.b16 %v1139
  %v2094 = vunpack.c.h.b16 %v1139
  %v2095 = vunpack.c.l.b16 %v1140
  %v2096 = vunpack.c.h.b16 %v1140
  %v2097 = vunpack.c.l.b16 %v1141
  %v2098 = vunpack.c.h.b16 %v1141
  %v2099 = vunpack.c.l.b16 %v1142
  %v2100 = vunpack.c.h.b16 %v1142
  %v2101 = vunpack.c.l.b16 %v1143
  %v2102 = vunpack.c.h.b16 %v1143
  %v2103 = vunpack.c.l.b16 %v1144
  %v2104 = vunpack.c.h.b16 %v1144
  %v2105 = vunpack.c.l.b16 %v1145
  %v2106 = vunpack.c.h.b16 %v1145
  %v2107 = vunpack.c.l.b16 %v1146
  %v2108 = vunpack.c.h.b16 %v1146
  %v2109 = vunpack.c.l.b16 %v1147
  %v2110 = vunpack.c.h.b16 %v1147
  %v2111 = vunpack.c.l.b16 %v1148
  %v2112 = vunpack.c.h.b16 %v1148
  %v2113 = vunpack.c.l.b16 %v1149
  %v2114 = vunpack.c.h.b16 %v1149
  %v2115 = vunpack.c.l.b16 %v1150
  %v2116 = vunpack.c.h.b16 %v1150
  %v2117 = vunpack.c.l.b16 %v1151
  %v2118 = vunpack.c.h.b16 %v1151
  %v2119 = vunpack.c.l.b16 %v1152
  %v2120 = vunpack.c.h.b16 %v1152
  %v2121 = vunpack.c.l.b16 %v1153
  %v2122 = vunpack.c.h.b16 %v1153
  %v2123 = vunpack.c.l.b16 %v1154
  %v2124 = vunpack.c.h.b16 %v1154
  %v2125 = vunpack.c.l.b16 %v1155
  %v2126 = vunpack.c.h.b16 %v1155
  %v2127 = vunpack.c.l.b16 %v1156
  %v2128 = vunpack.c.h.b16 %v1156
  %v2129 = vunpack.c.l.b16 %v1157
  %v2130 = vunpack.c.h.b16 %v1157
  %v2131 = vunpack.c.l.b16 %v1158
  %v2132 = vunpack.c.h.b16 %v1158
  %v2133 = vunpack.c.l.b16 %v1159
  %v2134 = vunpack.c.h.b16 %v1159
  %v2135 = vunpack.c.l.b16 %v1160
  %v2136 = vunpack.c.h.b16 %v1160
  %v2137 = vunpack.c.l.b16 %v1161
  %v2138 = vunpack.c.h.b16 %v1161
  %v2139 = vunpack.c.l.b16 %v1162
  %v2140 = vunpack.c.h.b16 %v1162
  %v2141 = vunpack.c.l.b16 %v1163
  %v2142 = vunpack.c.h.b16 %v1163
  %v2143 = vunpack.c.l.b16 %v1164
  %v2144 = vunpack.c.h.b16 %v1164
  %v2145 = vunpack.c.l.b16 %v1165
  %v2146 = vunpack.c.h.b16 %v1165
  %v2147 = vunpack.c.l.b16 %v1166
  %v2148 = vunpack.c.h.b16 %v1166
  %v2149 = vunpack.c.l.b16 %v1167
  %v2150 = vunpack.c.h.b16 %v1167
  %v2151 = vunpack.c.l.b16 %v1168
  %v2152 = vunpack.c.h.b16 %v1168
  %v2153 = vunpack.c.l.b16 %v1169
  %v2154 = vunpack.c.h.b16 %v1169
  %v2155 = vunpack.c.l.b16 %v1170
  %v2156 = vunpack.c.h.b16 %v1170
  %v2157 = vunpack.c.l.b16 %v1171
  %v2158 = vunpack.c.h.b16 %v1171
  %v2159 = vunpack.c.l.b16 %v1172
  %v2160 = vunpack.c.h.b16 %v1172
  %v2161 = vunpack.c.l.b16 %v1173
  %v2162 = vunpack.c.h.b16 %v1173
  %v2163 = vunpack.c.l.b16 %v1174
  %v2164 = vunpack.c.h.b16 %v1174
  %v2165 = vunpack.c.l.b16 %v1175
  %v2166 = vunpack.c.h.b16 %v1175
  %v2167 = vunpack.c.l.b16 %v1176
  %v2168 = vunpack.c.h.b16 %v1176
  %v2169 = vunpack.c.l.b16 %v1177
  %v2170 = vunpack.c.h.b16 %v1177
  %v2171 = vunpack.c.l.b16 %v1178
  %v2172 = vunpack.c.h.b16 %v1178
  %v2173 = vunpack.c.l.b16 %v1179
  %v2174 = vunpack.c.h.b16 %v1179
  %v2175 = vunpack.c.l.b16 %v1180
  %v2176 = vunpack.c.h.b16 %v1180
  %v2177 = vunpack.c.l.b16 %v1181
  %v2178 = vunpack.c.h.b16 %v1181
  %v2179 = vunpack.c.l.b16 %v1182
  %v2180 = vunpack.c.h.b16 %v1182
  %v2181 = vunpack.c.l.b16 %v1183
  %v2182 = vunpack.c.h.b16 %v1183
  %v2183 = vunpack.c.l.b16 %v1184
  %v2184 = vunpack.c.h.b16 %v1184
  %v2185 = vunpack.c.l.b16 %v1185
  %v2186 = vunpack.c.h.b16 %v1185
  %v2187 = vunpack.c.l.b16 %v1186
  %v2188 = vunpack.c.h.b16 %v1186
  %v2189 = vunpack.c.l.b16 %v1187
  %v2190 = vunpack.c.h.b16 %v1187
  %v2191 = vunpack.c.l.b16 %v1188
  %v2192 = vunpack.c.h.b16 %v1188
  %v2193 = vunpack.c.l.b16 %v1189
  %v2194 = vunpack.c.h.b16 %v1189
  %v2195 = vunpack.c.l.b16 %v1190
  %v2196 = vunpack.c.h.b16 %v1190
  %v2197 = vunpack.c.l.b16 %v1191
  %v2198 = vunpack.c.h.b16 %v1191
  %v2199 = vunpack.c.l.b16 %v1192
  %v2200 = vunpack.c.h.b16 %v1192
  %v2201 = vunpack.c.l.b16 %v1193
  %v2202 = vunpack.c.h.b16 %v1193
  %v2203 = vunpack.c.l.b16 %v1194
  %v2204 = vunpack.c.h.b16 %v1194
  %v2205 = vunpack.c.l.b16 %v1195
  %v2206 = vunpack.c.h.b16 %v1195
  %v2207 = vunpack.c.l.b16 %v1196
  %v2208 = vunpack.c.h.b16 %v1196
  %v2209 = vunpack.c.l.b16 %v1197
  %v2210 = vunpack.c.h.b16 %v1197
  %v2211 = vunpack.c.l.b16 %v1198
  %v2212 = vunpack.c.h.b16 %v1198
  %v2213 = vunpack.c.l.b16 %v1199
  %v2214 = vunpack.c.h.b16 %v1199
  %v2215 = vunpack.c.l.b16 %v1200
  %v2216 = vunpack.c.h.b16 %v1200
  %v2217 = vunpack.c.l.b16 %v1201
  %v2218 = vunpack.c.h.b16 %v1201
  %v2219 = vunpack.c.l.b16 %v1202
  %v2220 = vunpack.c.h.b16 %v1202
  %v2221 = vunpack.c.l.b16 %v1203
  %v2222 = vunpack.c.h.b16 %v1203
  %v2223 = vunpack.c.l.b16 %v1204
  %v2224 = vunpack.c.h.b16 %v1204
  %v2225 = vunpack.c.l.b16 %v1205
  %v2226 = vunpack.c.h.b16 %v1205
  %v2227 = vpack.c.b16 %v1657, %v1651
  %v2228 = vpack.c.b16 %v1658, %v1652
  %v2229 = vpack.c.b16 %v1659, %v1653
  %v2230 = vpack.c.b16 %v1660, %v1654
  %v2231 = vpack.c.b16 %v1661, %v1655
  %v2232 = vpack.c.b16 %v1662, %v1656
  %v2233 = vpack.c.b16 %v1669, %v1663
  %v2234 = vpack.c.b16 %v1670, %v1664
  %v2235 = vpack.c.b16 %v1671, %v1665
  %v2236 = vpack.c.b16 %v1672, %v1666
  %v2237 = vpack.c.b16 %v1673, %v1667
  %v2238 = vpack.c.b16 %v1674, %v1668
  %v2239 = vpack.c.b16 %v1681, %v1675
  %v2240 = vpack.c.b16 %v1682, %v1676
  %v2241 = vpack.c.b16 %v1683, %v1677
  %v2242 = vpack.c.b16 %v1684, %v1678
  %v2243 = vpack.c.b16 %v1685, %v1679
  %v2244 = vpack.c.b16 %v1686, %v1680
  %v2245 = vpack.c.b16 %v1693, %v1687
  %v2246 = vpack.c.b16 %v1694, %v1688
  %v2247 = vpack.c.b16 %v1695, %v1689
  %v2248 = vpack.c.b16 %v1696, %v1690
  %v2249 = vpack.c.b16 %v1697, %v1691
  %v2250 = vpack.c.b16 %v1698, %v1692
  %v2251 = vpack.c.b16 %v1705, %v1699
  %v2252 = vpack.c.b16 %v1706, %v1700
  %v2253 = vpack.c.b16 %v1707, %v1701
  %v2254 = vpack.c.b16 %v1708, %v1702
  %v2255 = vpack.c.b16 %v1709, %v1703
  %v2256 = vpack.c.b16 %v1710, %v1704
  %v2257 = vpack.c.b16 %v1717, %v1711
  %v2258 = vpack.c.b16 %v1718, %v1712
  %v2259 = vpack.c.b16 %v1719, %v1713
  %v2260 = vpack.c.b16 %v1720, %v1714
  %v2261 = vpack.c.b16 %v1721, %v1715
  %v2262 = vpack.c.b16 %v1722, %v1716
  %v2263 = vpack.c.b16 %v1729, %v1723
  %v2264 = vpack.c.b16 %v1730, %v1724
  %v2265 = vpack.c.b16 %v1731, %v1725
  %v2266 = vpack.c.b16 %v1732, %v1726
  %v2267 = vpack.c.b16 %v1733, %v1727
  %v2268 = vpack.c.b16 %v1734, %v1728
  %v2269 = vpack.c.b16 %v1741, %v1735
  %v2270 = vpack.c.b16 %v1742, %v1736
  %v2271 = vpack.c.b16 %v1743, %v1737
  %v2272 = vpack.c.b16 %v1744, %v1738
  %v2273 = vpack.c.b16 %v1745, %v1739
  %v2274 = vpack.c.b16 %v1746, %v1740
  %v2275 = vpack.c.b16 %v1753, %v1747
  %v2276 = vpack.c.b16 %v1754, %v1748
  %v2277 = vpack.c.b16 %v1755, %v1749
  %v2278 = vpack.c.b16 %v1756, %v1750
  %v2279 = vpack.c.b16 %v1757, %v1751
  %v2280 = vpack.c.b16 %v1758, %v1752
  %v2281 = vpack.c.b16 %v1765, %v1759
  %v2282 = vpack.c.b16 %v1766, %v1760
  %v2283 = vpack.c.b16 %v1767, %v1761
  %v2284 = vpack.c.b16 %v1768, %v1762
  %v2285 = vpack.c.b16 %v1769, %v1763
  %v2286 = vpack.c.b16 %v1770, %v1764
  %v2287 = vpack.c.b16 %v1777, %v1771
  %v2288 = vpack.c.b16 %v1778, %v1772
  %v2289 = vpack.c.b16 %v1779, %v1773
  %v2290 = vpack.c.b16 %v1780, %v1774
  %v2291 = vpack.c.b16 %v1781, %v1775
  %v2292 = vpack.c.b16 %v1782, %v1776
  %v2293 = vpack.c.b16 %v1789, %v1783
  %v2294 = vpack.c.b16 %v1790, %v1784
  %v2295 = vpack.c.b16 %v1791, %v1785
  %v2296 = vpack.c.b16 %v1792, %v1786
  %v2297 = vpack.c.b16 %v1793, %v1787
  %v2298 = vpack.c.b16 %v1794, %v1788
  %v2299 = vpack.c.b16 %v1801, %v1795
  %v2300 = vpack.c.b16 %v1802, %v1796
  %v2301 = vpack.c.b16 %v1803, %v1797
  %v2302 = vpack.c.b16 %v1804, %v1798
  %v2303 = vpack.c.b16 %v1805, %v1799
  %v2304 = vpack.c.b16 %v1806, %v1800
  %v2305 = vpack.c.b16 %v1813, %v1807
  %v2306 = vpack.c.b16 %v1814, %v1808
  %v2307 = vpack.c.b16 %v1815, %v1809
  %v2308 = vpack.c.b16 %v1816, %v1810
  %v2309 = vpack.c.b16 %v1817, %v1811
  %v2310 = vpack.c.b16 %v1818, %v1812
  %v2311 = vpack.c.b16 %v1825, %v1819
  %v2312 = vpack.c.b16 %v1826, %v1820
  %v2313 = vpack.c.b16 %v1827, %v1821
  %v2314 = vpack.c.b16 %v1828, %v1822
  %v2315 = vpack.c.b16 %v1829, %v1823
  %v2316 = vpack.c.b16 %v1830, %v1824
  %v2317 = vpack.c.b16 %v1837, %v1831
  %v2318 = vpack.c.b16 %v1838, %v1832
  %v2319 = vpack.c.b16 %v1839, %v1833
  %v2320 = vpack.c.b16 %v1840, %v1834
  %v2321 = vpack.c.b16 %v1841, %v1835
  %v2322 = vpack.c.b16 %v1842, %v1836
  %v2323 = vpack.c.b16 %v1849, %v1843
  %v2324 = vpack.c.b16 %v1850, %v1844
  %v2325 = vpack.c.b16 %v1851, %v1845
  %v2326 = vpack.c.b16 %v1852, %v1846
  %v2327 = vpack.c.b16 %v1853, %v1847
  %v2328 = vpack.c.b16 %v1854, %v1848
  %v2329 = vpack.c.b16 %v1861, %v1855
  %v2330 = vpack.c.b16 %v1862, %v1856
  %v2331 = vpack.c.b16 %v1863, %v1857
  %v2332 = vpack.c.b16 %v1864, %v1858
  %v2333 = vpack.c.b16 %v1865, %v1859
  %v2334 = vpack.c.b16 %v1866, %v1860
  %v2335 = vpack.c.b16 %v1873, %v1867
  %v2336 = vpack.c.b16 %v1874, %v1868
  %v2337 = vpack.c.b16 %v1875, %v1869
  %v2338 = vpack.c.b16 %v1876, %v1870
  %v2339 = vpack.c.b16 %v1877, %v1871
  %v2340 = vpack.c.b16 %v1878, %v1872
  %v2341 = vpack.c.b16 %v1885, %v1879
  %v2342 = vpack.c.b16 %v1886, %v1880
  %v2343 = vpack.c.b16 %v1887, %v1881
  %v2344 = vpack.c.b16 %v1888, %v1882
  %v2345 = vpack.c.b16 %v1889, %v1883
  %v2346 = vpack.c.b16 %v1890, %v1884
  %v2347 = vpack.c.b16 %v1897, %v1891
  %v2348 = vpack.c.b16 %v1898, %v1892
  %v2349 = vpack.c.b16 %v1899, %v1893
  %v2350 = vpack.c.b16 %v1900, %v1894
  %v2351 = vpack.c.b16 %v1901, %v1895
  %v2352 = vpack.c.b16 %v1902, %v1896
  %v2353 = vpack.c.b16 %v1909, %v1903
  %v2354 = vpack.c.b16 %v1910, %v1904
  %v2355 = vpack.c.b16 %v1911, %v1905
  %v2356 = vpack.c.b16 %v1912, %v1906
  %v2357 = vpack.c.b16 %v1913, %v1907
  %v2358 = vpack.c.b16 %v1914, %v1908
  %v2359 = vpack.c.b16 %v1921, %v1915
  %v2360 = vpack.c.b16 %v1922, %v1916
  %v2361 = vpack.c.b16 %v1923, %v1917
  %v2362 = vpack.c.b16 %v1924, %v1918
  %v2363 = vpack.c.b16 %v1925, %v1919
  %v2364 = vpack.c.b16 %v1926, %v1920
  %v2365 = vpack.c.b16 %v1933, %v1927
  %v2366 = vpack.c.b16 %v1934, %v1928
  %v2367 = vpack.c.b16 %v1935, %v1929
  %v2368 = vpack.c.b16 %v1936, %v1930
  %v2369 = vpack.c.b16 %v1937, %v1931
  %v2370 = vpack.c.b16 %v1938, %v1932
  %v2371 = vpack.c.b16 %v1945, %v1939
  %v2372 = vpack.c.b16 %v1946, %v1940
  %v2373 = vpack.c.b16 %v1947, %v1941
  %v2374 = vpack.c.b16 %v1948, %v1942
  %v2375 = vpack.c.b16 %v1949, %v1943
  %v2376 = vpack.c.b16 %v1950, %v1944
  %v2377 = vpack.c.b16 %v1957, %v1951
  %v2378 = vpack.c.b16 %v1958, %v1952
  %v2379 = vpack.c.b16 %v1959, %v1953
  %v2380 = vpack.c.b16 %v1960, %v1954
  %v2381 = vpack.c.b16 %v1961, %v1955
  %v2382 = vpack.c.b16 %v1962, %v1956
  %v2383 = vpack.c.b16 %v1969, %v1963
  %v2384 = vpack.c.b16 %v1970, %v1964
  %v2385 = vpack.c.b16 %v1971, %v1965
  %v2386 = vpack.c.b16 %v1972, %v1966
  %v2387 = vpack.c.b16 %v1973, %v1967
  %v2388 = vpack.c.b16 %v1974, %v1968
  %v2389 = vpack.c.b16 %v1981, %v1975
  %v2390 = vpack.c.b16 %v1982, %v1976
  %v2391 = vpack.c.b16 %v1983, %v1977
  %v2392 = vpack.c.b16 %v1984, %v1978
  %v2393 = vpack.c.b16 %v1985, %v1979
  %v2394 = vpack.c.b16 %v1986, %v1980
  %v2395 = vpack.c.b16 %v1993, %v1987
  %v2396 = vpack.c.b16 %v1994, %v1988
  %v2397 = vpack.c.b16 %v1995, %v1989
  %v2398 = vpack.c.b16 %v1996, %v1990
  %v2399 = vpack.c.b16 %v1997, %v1991
  %v2400 = vpack.c.b16 %v1998, %v1992
  %v2401 = vpack.c.b16 %v2005, %v1999
  %v2402 = vpack.c.b16 %v2006, %v2000
  %v2403 = vpack.c.b16 %v2007, %v2001
  %v2404 = vpack.c.b16 %v2008, %v2002
  %v2405 = vpack.c.b16 %v2009, %v2003
  %v2406 = vpack.c.b16 %v2010, %v2004
  %v2407 = vpack.c.b16 %v2017, %v2011
  %v2408 = vpack.c.b16 %v2018, %v2012
  %v2409 = vpack.c.b16 %v2019, %v2013
  %v2410 = vpack.c.b16 %v2020, %v2014
  %v2411 = vpack.c.b16 %v2021, %v2015
  %v2412 = vpack.c.b16 %v2022, %v2016
  %v2413 = vpack.c.b16 %v2029, %v2023
  %v2414 = vpack.c.b16 %v2030, %v2024
  %v2415 = vpack.c.b16 %v2031, %v2025
  %v2416 = vpack.c.b16 %v2032, %v2026
  %v2417 = vpack.c.b16 %v2033, %v2027
  %v2418 = vpack.c.b16 %v2034, %v2028
  %v2419 = vpack.c.b16 %v2041, %v2035
  %v2420 = vpack.c.b16 %v2042, %v2036
  %v2421 = vpack.c.b16 %v2043, %v2037
  %v2422 = vpack.c.b16 %v2044, %v2038
  %v2423 = vpack.c.b16 %v2045, %v2039
  %v2424 = vpack.c.b16 %v2046, %v2040
  %v2425 = vpack.c.b16 %v2053, %v2047
  %v2426 = vpack.c.b16 %v2054, %v2048
  %v2427 = vpack.c.b16 %v2055, %v2049
  %v2428 = vpack.c.b16 %v2056, %v2050
  %v2429 = vpack.c.b16 %v2057, %v2051
  %v2430 = vpack.c.b16 %v2058, %v2052
  %v2431 = vpack.c.b16 %v2065, %v2059
  %v2432 = vpack.c.b16 %v2066, %v2060
  %v2433 = vpack.c.b16 %v2067, %v2061
  %v2434 = vpack.c.b16 %v2068, %v2062
  %v2435 = vpack.c.b16 %v2069, %v2063
  %v2436 = vpack.c.b16 %v2070, %v2064
  %v2437 = vpack.c.b16 %v2077, %v2071
  %v2438 = vpack.c.b16 %v2078, %v2072
  %v2439 = vpack.c.b16 %v2079, %v2073
  %v2440 = vpack.c.b16 %v2080, %v2074
  %v2441 = vpack.c.b16 %v2081, %v2075
  %v2442 = vpack.c.b16 %v2082, %v2076
  %v2443 = vpack.c.b16 %v2089, %v2083
  %v2444 = vpack.c.b16 %v2090, %v2084
  %v2445 = vpack.c.b16 %v2091, %v2085
  %v2446 = vpack.c.b16 %v2092, %v2086
  %v2447 = vpack.c.b16 %v2093, %v2087
  %v2448 = vpack.c.b16 %v2094, %v2088
  %v2449 = vpack.c.b16 %v2101, %v2095
  %v2450 = vpack.c.b16 %v2102, %v2096
  %v2451 = vpack.c.b16 %v2103, %v2097
  %v2452 = vpack.c.b16 %v2104, %v2098
  %v2453 = vpack.c.b16 %v2105, %v2099
  %v2454 = vpack.c.b16 %v2106, %v2100
  %v2455 = vpack.c.b16 %v2113, %v2107
  %v2456 = vpack.c.b16 %v2114, %v2108
  %v2457 = vpack.c.b16 %v2115, %v2109
  %v2458 = vpack.c.b16 %v2116, %v2110
  %v2459 = vpack.c.b16 %v2117, %v2111
  %v2460 = vpack.c.b16 %v2118, %v2112
  %v2461 = vpack.c.b16 %v2125, %v2119
  %v2462 = vpack.c.b16 %v2126, %v2120
  %v2463 = vpack.c.b16 %v2127, %v2121
  %v2464 = vpack.c.b16 %v2128, %v2122
  %v2465 = vpack.c.b16 %v2129, %v2123
  %v2466 = vpack.c.b16 %v2130, %v2124
  %v2467 = vpack.c.b16 %v2137, %v2131
  %v2468 = vpack.c.b16 %v2138, %v2132
  %v2469 = vpack.c.b16 %v2139, %v2133
  %v2470 = vpack.c.b16 %v2140, %v2134
  %v2471 = vpack.c.b16 %v2141, %v2135
  %v2472 = vpack.c.b16 %v2142, %v2136
  %v2473 = vpack.c.b16 %v2149, %v2143
  %v2474 = vpack.c.b16 %v2150, %v2144
  %v2475 = vpack.c.b16 %v2151, %v2145
  %v2476 = vpack.c.b16 %v2152, %v2146
  %v2477 = vpack.c.b16 %v2153, %v2147
  %v2478 = vpack.c.b16 %v2154, %v2148
  %v2479 = vpack.c.b16 %v2161, %v2155
  %v2480 = vpack.c.b16 %v2162, %v2156
  %v2481 = vpack.c.b16 %v2163, %v2157
  %v2482 = vpack.c.b16 %v2164, %v2158
  %v2483 = vpack.c.b16 %v2165, %v2159
  %v2484 = vpack.c.b16 %v2166, %v2160
  %v2485 = vpack.c.b16 %v2173, %v2167
  %v2486 = vpack.c.b16 %v2174, %v2168
  %v2487 = vpack.c.b16 %v2175, %v2169
  %v2488 = vpack.c.b16 %v2176, %v2170
  %v2489 = vpack.c.b16 %v2177, %v2171
  %v2490 = vpack.c.b16 %v2178, %v2172
  %v2491 = vpack.c.b16 %v2185, %v2179
  %v2492 = vpack.c.b16 %v2186, %v2180
  %v2493 = vpack.c.b16 %v2187, %v2181
  %v2494 = vpack.c.b16 %v2188, %v2182
  %v2495 = vpack.c.b16 %v2189, %v2183
  %v2496 = vpack.c.b16 %v2190, %v2184
  %v2497 = vpack.c.b16 %v2197, %v2191
  %v2498 = vpack.c.b16 %v2198, %v2192
  %v2499 = vpack.c.b16 %v2199, %v2193
  %v2500 = vpack.c.b16 %v2200, %v2194
  %v2501 = vpack.c.b16 %v2201, %v2195
  %v2502 = vpack.c.b16 %v2202, %v2196
  %v2503 = vpack.c.b16 %v2209, %v2203
  %v2504 = vpack.c.b16 %v2210, %v2204
  %v2505 = vpack.c.b16 %v2211, %v2205
  %v2506 = vpack.c.b16 %v2212, %v2206
  %v2507 = vpack.c.b16 %v2213, %v2207
  %v2508 = vpack.c.b16 %v2214, %v2208
  %v2509 = vpack.c.b16 %v2221, %v2215
  %v2510 = vpack.c.b16 %v2222, %v2216
  %v2511 = vpack.c.b16 %v2223, %v2217
  %v2512 = vpack.c.b16 %v2224, %v2218
  %v2513 = vpack.c.b16 %v2225, %v2219
  %v2514 = vpack.c.b16 %v2226, %v2220
  %2803 = vmatprep.subr.bf16.mxu0 %v2228
  %2804 = vmatpush1.bf16.msra.mxu0 %v2227
  %2805 = vmatprep.subr.bf16.mxu0 %v2234
  %2806 = vmatpush1.bf16.msra.mxu0 %v2233
  %2807 = vmatprep.subr.bf16.mxu0 %v2240
  %2808 = vmatpush1.bf16.msra.mxu0 %v2239
  %2809 = vmatprep.subr.bf16.mxu0 %v2246
  %2810 = vmatpush1.bf16.msra.mxu0 %v2245
  %2811 = vmatprep.subr.bf16.mxu0 %v2252
  %2812 = vmatpush1.bf16.msra.mxu0 %v2251
  %2813 = vmatprep.subr.bf16.mxu0 %v2258
  %2814 = vmatpush1.bf16.msra.mxu0 %v2257
  %2815 = vmatprep.subr.bf16.mxu0 %v2264
  %2816 = vmatpush1.bf16.msra.mxu0 %v2263
  %2817 = vmatprep.subr.bf16.mxu0 %v2270
  %2818 = vmatpush1.bf16.msra.mxu0 %v2269
  %2819 = vmatprep.subr.bf16.mxu0 %v2276
  %2820 = vmatpush1.bf16.msra.mxu0 %v2275
  %2821 = vmatprep.subr.bf16.mxu0 %v2282
  %2822 = vmatpush1.bf16.msra.mxu0 %v2281
  %2823 = vmatprep.subr.bf16.mxu0 %v2288
  %2824 = vmatpush1.bf16.msra.mxu0 %v2287
  %2825 = vmatprep.subr.bf16.mxu0 %v2294
  %2826 = vmatpush1.bf16.msra.mxu0 %v2293
  %2827 = vmatprep.subr.bf16.mxu0 %v2300
  %2828 = vmatpush1.bf16.msra.mxu0 %v2299
  %2829 = vmatprep.subr.bf16.mxu0 %v2306
  %2830 = vmatpush1.bf16.msra.mxu0 %v2305
  %2831 = vmatprep.subr.bf16.mxu0 %v2312
  %2832 = vmatpush1.bf16.msra.mxu0 %v2311
  %2833 = vmatprep.subr.bf16.mxu0 %v2318
  %2834 = vmatpush1.bf16.msra.mxu0 %v2317
  %2835 = vmatprep.mubr.bf16.mxu0 %v1352
  %2836 = vmatmul.mubr.bf16.gmra.mrb[0].mxu0 %v1351
  %v2837 = vpop.f32.mrb[0].mxu0
  %v2838 = vadd.f32 0.0, %v2837
  %v2839 = vpop.f32.mrb[0].mxu0
  %v2840 = vadd.f32 0.0, %v2839
  %v2841 = vpop.f32.mrb[0].mxu0
  %v2842 = vpop.f32.mrb[0].mxu0
  %2843 = vdwg.mxu0
  %2844 = vmatprep.subr.bf16.mxu0 %v2324
  %2845 = vmatpush1.bf16.msra.mxu0 %v2323
  %2846 = vmatprep.subr.bf16.mxu0 %v2330
  %2847 = vmatpush1.bf16.msra.mxu0 %v2329
  %2848 = vmatprep.subr.bf16.mxu0 %v2336
  %2849 = vmatpush1.bf16.msra.mxu0 %v2335
  %2850 = vmatprep.subr.bf16.mxu0 %v2342
  %2851 = vmatpush1.bf16.msra.mxu0 %v2341
  %2852 = vmatprep.subr.bf16.mxu0 %v2348
  %2853 = vmatpush1.bf16.msra.mxu0 %v2347
  %2854 = vmatprep.subr.bf16.mxu0 %v2354
  %2855 = vmatpush1.bf16.msra.mxu0 %v2353
  %2856 = vmatprep.subr.bf16.mxu0 %v2360
  %2857 = vmatpush1.bf16.msra.mxu0 %v2359
  %2858 = vmatprep.subr.bf16.mxu0 %v2366
  %2859 = vmatpush1.bf16.msra.mxu0 %v2365
  %2860 = vmatprep.subr.bf16.mxu0 %v2372
  %2861 = vmatpush1.bf16.msra.mxu0 %v2371
  %2862 = vmatprep.subr.bf16.mxu0 %v2378
  %2863 = vmatpush1.bf16.msra.mxu0 %v2377
  %2864 = vmatprep.subr.bf16.mxu0 %v2384
  %2865 = vmatpush1.bf16.msra.mxu0 %v2383
  %2866 = vmatprep.subr.bf16.mxu0 %v2390
  %2867 = vmatpush1.bf16.msra.mxu0 %v2389
  %2868 = vmatprep.subr.bf16.mxu0 %v2396
  %2869 = vmatpush1.bf16.msra.mxu0 %v2395
  %2870 = vmatprep.subr.bf16.mxu0 %v2402
  %2871 = vmatpush1.bf16.msra.mxu0 %v2401
  %2872 = vmatprep.subr.bf16.mxu0 %v2408
  %2873 = vmatpush1.bf16.msra.mxu0 %v2407
  %2874 = vmatprep.subr.bf16.mxu0 %v2414
  %2875 = vmatpush1.bf16.msra.mxu0 %v2413
  %2876 = vmatprep.mubr.bf16.mxu0 %v1354
  %2877 = vmatmul.mubr.bf16.gmra.mrb[0].mxu0 %v1353
  %v2878 = vpop.f32.mrb[0].mxu0
  %v2879 = vadd.f32 %v2838, %v2878
  %v2880 = vpop.f32.mrb[0].mxu0
  %v2881 = vadd.f32 %v2840, %v2880
  %v2882 = vpop.f32.mrb[0].mxu0
  %v2883 = vpop.f32.mrb[0].mxu0
  %2884 = vdwg.mxu0
  %2885 = vmatprep.subr.bf16.mxu0 %v2420
  %2886 = vmatpush1.bf16.msra.mxu0 %v2419
  %2887 = vmatprep.subr.bf16.mxu0 %v2426
  %2888 = vmatpush1.bf16.msra.mxu0 %v2425
  %2889 = vmatprep.subr.bf16.mxu0 %v2432
  %2890 = vmatpush1.bf16.msra.mxu0 %v2431
  %2891 = vmatprep.subr.bf16.mxu0 %v2438
  %2892 = vmatpush1.bf16.msra.mxu0 %v2437
  %2893 = vmatprep.subr.bf16.mxu0 %v2444
  %2894 = vmatpush1.bf16.msra.mxu0 %v2443
  %2895 = vmatprep.subr.bf16.mxu0 %v2450
  %2896 = vmatpush1.bf16.msra.mxu0 %v2449
  %2897 = vmatprep.subr.bf16.mxu0 %v2456
  %2898 = vmatpush1.bf16.msra.mxu0 %v2455
  %2899 = vmatprep.subr.bf16.mxu0 %v2462
  %2900 = vmatpush1.bf16.msra.mxu0 %v2461
  %2901 = vmatprep.subr.bf16.mxu0 %v2468
  %2902 = vmatpush1.bf16.msra.mxu0 %v2467
  %2903 = vmatprep.subr.bf16.mxu0 %v2474
  %2904 = vmatpush1.bf16.msra.mxu0 %v2473
  %2905 = vmatprep.subr.bf16.mxu0 %v2480
  %2906 = vmatpush1.bf16.msra.mxu0 %v2479
  %2907 = vmatprep.subr.bf16.mxu0 %v2486
  %2908 = vmatpush1.bf16.msra.mxu0 %v2485
  %2909 = vmatprep.subr.bf16.mxu0 %v2492
  %2910 = vmatpush1.bf16.msra.mxu0 %v2491
  %2911 = vmatprep.subr.bf16.mxu0 %v2498
  %2912 = vmatpush1.bf16.msra.mxu0 %v2497
  %2913 = vmatprep.subr.bf16.mxu0 %v2504
  %2914 = vmatpush1.bf16.msra.mxu0 %v2503
  %2915 = vmatprep.subr.bf16.mxu0 %v2510
  %2916 = vmatpush1.bf16.msra.mxu0 %v2509
  %2917 = vmatprep.mubr.bf16.mxu0 %v1356
  %2918 = vmatmul.mubr.bf16.gmra.mrb[0].mxu0 %v1355
  %v2919 = vpop.f32.mrb[0].mxu0
  %v2920 = vadd.f32 %v2879, %v2919
  %v2921 = vpop.f32.mrb[0].mxu0
  %v2922 = vadd.f32 %v2881, %v2921
  %v2923 = vpop.f32.mrb[0].mxu0
  %v2924 = vpop.f32.mrb[0].mxu0
  %2925 = vdwg.mxu0
  %2926 = vmatprep.subr.bf16.mxu0 %v2230
  %2927 = vmatpush1.bf16.msra.mxu0 %v2229
  %2928 = vmatprep.subr.bf16.mxu0 %v2236
  %2929 = vmatpush1.bf16.msra.mxu0 %v2235
  %2930 = vmatprep.subr.bf16.mxu0 %v2242
  %2931 = vmatpush1.bf16.msra.mxu0 %v2241
  %2932 = vmatprep.subr.bf16.mxu0 %v2248
  %2933 = vmatpush1.bf16.msra.mxu0 %v2247
  %2934 = vmatprep.subr.bf16.mxu0 %v2254
  %2935 = vmatpush1.bf16.msra.mxu0 %v2253
  %2936 = vmatprep.subr.bf16.mxu0 %v2260
  %2937 = vmatpush1.bf16.msra.mxu0 %v2259
  %2938 = vmatprep.subr.bf16.mxu0 %v2266
  %2939 = vmatpush1.bf16.msra.mxu0 %v2265
  %2940 = vmatprep.subr.bf16.mxu0 %v2272
  %2941 = vmatpush1.bf16.msra.mxu0 %v2271
  %2942 = vmatprep.subr.bf16.mxu0 %v2278
  %2943 = vmatpush1.bf16.msra.mxu0 %v2277
  %2944 = vmatprep.subr.bf16.mxu0 %v2284
  %2945 = vmatpush1.bf16.msra.mxu0 %v2283
  %2946 = vmatprep.subr.bf16.mxu0 %v2290
  %2947 = vmatpush1.bf16.msra.mxu0 %v2289
  %2948 = vmatprep.subr.bf16.mxu0 %v2296
  %2949 = vmatpush1.bf16.msra.mxu0 %v2295
  %2950 = vmatprep.subr.bf16.mxu0 %v2302
  %2951 = vmatpush1.bf16.msra.mxu0 %v2301
  %2952 = vmatprep.subr.bf16.mxu0 %v2308
  %2953 = vmatpush1.bf16.msra.mxu0 %v2307
  %2954 = vmatprep.subr.bf16.mxu0 %v2314
  %2955 = vmatpush1.bf16.msra.mxu0 %v2313
  %2956 = vmatprep.subr.bf16.mxu0 %v2320
  %2957 = vmatpush1.bf16.msra.mxu0 %v2319
  %2958 = vmatprep.mubr.bf16.mxu0 %v1352
  %2959 = vmatmul.mubr.bf16.gmra.mrb[0].mxu0 %v1351
  %v2960 = vpop.f32.mrb[0].mxu0
  %v2961 = vadd.f32 0.0, %v2960
  %v2962 = vpop.f32.mrb[0].mxu0
  %v2963 = vadd.f32 0.0, %v2962
  %v2964 = vpop.f32.mrb[0].mxu0
  %v2965 = vpop.f32.mrb[0].mxu0
  %2966 = vdwg.mxu0
  %2967 = vmatprep.subr.bf16.mxu0 %v2326
  %2968 = vmatpush1.bf16.msra.mxu0 %v2325
  %2969 = vmatprep.subr.bf16.mxu0 %v2332
  %2970 = vmatpush1.bf16.msra.mxu0 %v2331
  %2971 = vmatprep.subr.bf16.mxu0 %v2338
  %2972 = vmatpush1.bf16.msra.mxu0 %v2337
  %2973 = vmatprep.subr.bf16.mxu0 %v2344
  %2974 = vmatpush1.bf16.msra.mxu0 %v2343
  %2975 = vmatprep.subr.bf16.mxu0 %v2350
  %2976 = vmatpush1.bf16.msra.mxu0 %v2349
  %2977 = vmatprep.subr.bf16.mxu0 %v2356
  %2978 = vmatpush1.bf16.msra.mxu0 %v2355
  %2979 = vmatprep.subr.bf16.mxu0 %v2362
  %2980 = vmatpush1.bf16.msra.mxu0 %v2361
  %2981 = vmatprep.subr.bf16.mxu0 %v2368
  %2982 = vmatpush1.bf16.msra.mxu0 %v2367
  %2983 = vmatprep.subr.bf16.mxu0 %v2374
  %2984 = vmatpush1.bf16.msra.mxu0 %v2373
  %2985 = vmatprep.subr.bf16.mxu0 %v2380
  %2986 = vmatpush1.bf16.msra.mxu0 %v2379
  %2987 = vmatprep.subr.bf16.mxu0 %v2386
  %2988 = vmatpush1.bf16.msra.mxu0 %v2385
  %2989 = vmatprep.subr.bf16.mxu0 %v2392
  %2990 = vmatpush1.bf16.msra.mxu0 %v2391
  %2991 = vmatprep.subr.bf16.mxu0 %v2398
  %2992 = vmatpush1.bf16.msra.mxu0 %v2397
  %2993 = vmatprep.subr.bf16.mxu0 %v2404
  %2994 = vmatpush1.bf16.msra.mxu0 %v2403
  %2995 = vmatprep.subr.bf16.mxu0 %v2410
  %2996 = vmatpush1.bf16.msra.mxu0 %v2409
  %2997 = vmatprep.subr.bf16.mxu0 %v2416
  %2998 = vmatpush1.bf16.msra.mxu0 %v2415
  %2999 = vmatprep.mubr.bf16.mxu0 %v1354
  %3000 = vmatmul.mubr.bf16.gmra.mrb[0].mxu0 %v1353
  %v3001 = vpop.f32.mrb[0].mxu0
  %v3002 = vadd.f32 %v2961, %v3001
  %v3003 = vpop.f32.mrb[0].mxu0
  %v3004 = vadd.f32 %v2963, %v3003
  %v3005 = vpop.f32.mrb[0].mxu0
  %v3006 = vpop.f32.mrb[0].mxu0
  %3007 = vdwg.mxu0
  %3008 = vmatprep.subr.bf16.mxu0 %v2422
  %3009 = vmatpush1.bf16.msra.mxu0 %v2421
  %3010 = vmatprep.subr.bf16.mxu0 %v2428
  %3011 = vmatpush1.bf16.msra.mxu0 %v2427
  %3012 = vmatprep.subr.bf16.mxu0 %v2434
  %3013 = vmatpush1.bf16.msra.mxu0 %v2433
  %3014 = vmatprep.subr.bf16.mxu0 %v2440
  %3015 = vmatpush1.bf16.msra.mxu0 %v2439
  %3016 = vmatprep.subr.bf16.mxu0 %v2446
  %3017 = vmatpush1.bf16.msra.mxu0 %v2445
  %3018 = vmatprep.subr.bf16.mxu0 %v2452
  %3019 = vmatpush1.bf16.msra.mxu0 %v2451
  %3020 = vmatprep.subr.bf16.mxu0 %v2458
  %3021 = vmatpush1.bf16.msra.mxu0 %v2457
  %3022 = vmatprep.subr.bf16.mxu0 %v2464
  %3023 = vmatpush1.bf16.msra.mxu0 %v2463
  %3024 = vmatprep.subr.bf16.mxu0 %v2470
  %3025 = vmatpush1.bf16.msra.mxu0 %v2469
  %3026 = vmatprep.subr.bf16.mxu0 %v2476
  %3027 = vmatpush1.bf16.msra.mxu0 %v2475
  %3028 = vmatprep.subr.bf16.mxu0 %v2482
  %3029 = vmatpush1.bf16.msra.mxu0 %v2481
  %3030 = vmatprep.subr.bf16.mxu0 %v2488
  %3031 = vmatpush1.bf16.msra.mxu0 %v2487
  %3032 = vmatprep.subr.bf16.mxu0 %v2494
  %3033 = vmatpush1.bf16.msra.mxu0 %v2493
  %3034 = vmatprep.subr.bf16.mxu0 %v2500
  %3035 = vmatpush1.bf16.msra.mxu0 %v2499
  %3036 = vmatprep.subr.bf16.mxu0 %v2506
  %3037 = vmatpush1.bf16.msra.mxu0 %v2505
  %3038 = vmatprep.subr.bf16.mxu0 %v2512
  %3039 = vmatpush1.bf16.msra.mxu0 %v2511
  %3040 = vmatprep.mubr.bf16.mxu0 %v1356
  %3041 = vmatmul.mubr.bf16.gmra.mrb[0].mxu0 %v1355
  %v3042 = vpop.f32.mrb[0].mxu0
  %v3043 = vadd.f32 %v3002, %v3042
  %v3044 = vpop.f32.mrb[0].mxu0
  %v3045 = vadd.f32 %v3004, %v3044
  %v3046 = vpop.f32.mrb[0].mxu0
  %v3047 = vpop.f32.mrb[0].mxu0
  %3048 = vdwg.mxu0
  %3049 = vmatprep.subr.bf16.mxu0 %v2232
  %3050 = vmatpush1.bf16.msra.mxu0 %v2231
  %3051 = vmatprep.subr.bf16.mxu0 %v2238
  %3052 = vmatpush1.bf16.msra.mxu0 %v2237
  %3053 = vmatprep.subr.bf16.mxu0 %v2244
  %3054 = vmatpush1.bf16.msra.mxu0 %v2243
  %3055 = vmatprep.subr.bf16.mxu0 %v2250
  %3056 = vmatpush1.bf16.msra.mxu0 %v2249
  %3057 = vmatprep.subr.bf16.mxu0 %v2256
  %3058 = vmatpush1.bf16.msra.mxu0 %v2255
  %3059 = vmatprep.subr.bf16.mxu0 %v2262
  %3060 = vmatpush1.bf16.msra.mxu0 %v2261
  %3061 = vmatprep.subr.bf16.mxu0 %v2268
  %3062 = vmatpush1.bf16.msra.mxu0 %v2267
  %3063 = vmatprep.subr.bf16.mxu0 %v2274
  %3064 = vmatpush1.bf16.msra.mxu0 %v2273
  %3065 = vmatprep.subr.bf16.mxu0 %v2280
  %3066 = vmatpush1.bf16.msra.mxu0 %v2279
  %3067 = vmatprep.subr.bf16.mxu0 %v2286
  %3068 = vmatpush1.bf16.msra.mxu0 %v2285
  %3069 = vmatprep.subr.bf16.mxu0 %v2292
  %3070 = vmatpush1.bf16.msra.mxu0 %v2291
  %3071 = vmatprep.subr.bf16.mxu0 %v2298
  %3072 = vmatpush1.bf16.msra.mxu0 %v2297
  %3073 = vmatprep.subr.bf16.mxu0 %v2304
  %3074 = vmatpush1.bf16.msra.mxu0 %v2303
  %3075 = vmatprep.subr.bf16.mxu0 %v2310
  %3076 = vmatpush1.bf16.msra.mxu0 %v2309
  %3077 = vmatprep.subr.bf16.mxu0 %v2316
  %3078 = vmatpush1.bf16.msra.mxu0 %v2315
  %3079 = vmatprep.subr.bf16.mxu0 %v2322
  %3080 = vmatpush1.bf16.msra.mxu0 %v2321
  %3081 = vmatprep.mubr.bf16.mxu0 %v1352
  %3082 = vmatmul.mubr.bf16.gmra.mrb[0].mxu0 %v1351
  %v3083 = vpop.f32.mrb[0].mxu0
  %v3084 = vadd.f32 0.0, %v3083
  %v3085 = vpop.f32.mrb[0].mxu0
  %v3086 = vadd.f32 0.0, %v3085
  %v3087 = vpop.f32.mrb[0].mxu0
  %v3088 = vpop.f32.mrb[0].mxu0
  %3089 = vdwg.mxu0
  %3090 = vmatprep.subr.bf16.mxu0 %v2328
  %3091 = vmatpush1.bf16.msra.mxu0 %v2327
  %3092 = vmatprep.subr.bf16.mxu0 %v2334
  %3093 = vmatpush1.bf16.msra.mxu0 %v2333
  %3094 = vmatprep.subr.bf16.mxu0 %v2340
  %3095 = vmatpush1.bf16.msra.mxu0 %v2339
  %3096 = vmatprep.subr.bf16.mxu0 %v2346
  %3097 = vmatpush1.bf16.msra.mxu0 %v2345
  %3098 = vmatprep.subr.bf16.mxu0 %v2352
  %3099 = vmatpush1.bf16.msra.mxu0 %v2351
  %3100 = vmatprep.subr.bf16.mxu0 %v2358
  %3101 = vmatpush1.bf16.msra.mxu0 %v2357
  %3102 = vmatprep.subr.bf16.mxu0 %v2364
  %3103 = vmatpush1.bf16.msra.mxu0 %v2363
  %3104 = vmatprep.subr.bf16.mxu0 %v2370
  %3105 = vmatpush1.bf16.msra.mxu0 %v2369
  %3106 = vmatprep.subr.bf16.mxu0 %v2376
  %3107 = vmatpush1.bf16.msra.mxu0 %v2375
  %3108 = vmatprep.subr.bf16.mxu0 %v2382
  %3109 = vmatpush1.bf16.msra.mxu0 %v2381
  %3110 = vmatprep.subr.bf16.mxu0 %v2388
  %3111 = vmatpush1.bf16.msra.mxu0 %v2387
  %3112 = vmatprep.subr.bf16.mxu0 %v2394
  %3113 = vmatpush1.bf16.msra.mxu0 %v2393
  %3114 = vmatprep.subr.bf16.mxu0 %v2400
  %3115 = vmatpush1.bf16.msra.mxu0 %v2399
  %3116 = vmatprep.subr.bf16.mxu0 %v2406
  %3117 = vmatpush1.bf16.msra.mxu0 %v2405
  %3118 = vmatprep.subr.bf16.mxu0 %v2412
  %3119 = vmatpush1.bf16.msra.mxu0 %v2411
  %3120 = vmatprep.subr.bf16.mxu0 %v2418
  %3121 = vmatpush1.bf16.msra.mxu0 %v2417
  %3122 = vmatprep.mubr.bf16.mxu0 %v1354
  %3123 = vmatmul.mubr.bf16.gmra.mrb[0].mxu0 %v1353
  %v3124 = vpop.f32.mrb[0].mxu0
  %v3125 = vadd.f32 %v3084, %v3124
  %v3126 = vpop.f32.mrb[0].mxu0
  %v3127 = vadd.f32 %v3086, %v3126
  %v3128 = vpop.f32.mrb[0].mxu0
  %v3129 = vpop.f32.mrb[0].mxu0
  %3130 = vdwg.mxu0
  %3131 = vmatprep.subr.bf16.mxu0 %v2424
  %3132 = vmatpush1.bf16.msra.mxu0 %v2423
  %3133 = vmatprep.subr.bf16.mxu0 %v2430
  %3134 = vmatpush1.bf16.msra.mxu0 %v2429
  %3135 = vmatprep.subr.bf16.mxu0 %v2436
  %3136 = vmatpush1.bf16.msra.mxu0 %v2435
  %3137 = vmatprep.subr.bf16.mxu0 %v2442
  %3138 = vmatpush1.bf16.msra.mxu0 %v2441
  %3139 = vmatprep.subr.bf16.mxu0 %v2448
  %3140 = vmatpush1.bf16.msra.mxu0 %v2447
  %3141 = vmatprep.subr.bf16.mxu0 %v2454
  %3142 = vmatpush1.bf16.msra.mxu0 %v2453
  %3143 = vmatprep.subr.bf16.mxu0 %v2460
  %3144 = vmatpush1.bf16.msra.mxu0 %v2459
  %3145 = vmatprep.subr.bf16.mxu0 %v2466
  %3146 = vmatpush1.bf16.msra.mxu0 %v2465
  %3147 = vmatprep.subr.bf16.mxu0 %v2472
  %3148 = vmatpush1.bf16.msra.mxu0 %v2471
  %3149 = vmatprep.subr.bf16.mxu0 %v2478
  %3150 = vmatpush1.bf16.msra.mxu0 %v2477
  %3151 = vmatprep.subr.bf16.mxu0 %v2484
  %3152 = vmatpush1.bf16.msra.mxu0 %v2483
  %3153 = vmatprep.subr.bf16.mxu0 %v2490
  %3154 = vmatpush1.bf16.msra.mxu0 %v2489
  %3155 = vmatprep.subr.bf16.mxu0 %v2496
  %3156 = vmatpush1.bf16.msra.mxu0 %v2495
  %3157 = vmatprep.subr.bf16.mxu0 %v2502
  %3158 = vmatpush1.bf16.msra.mxu0 %v2501
  %3159 = vmatprep.subr.bf16.mxu0 %v2508
  %3160 = vmatpush1.bf16.msra.mxu0 %v2507
  %3161 = vmatprep.subr.bf16.mxu0 %v2514
  %3162 = vmatpush1.bf16.msra.mxu0 %v2513
  %3163 = vmatprep.mubr.bf16.mxu0 %v1356
  %3164 = vmatmul.mubr.bf16.gmra.mrb[0].mxu0 %v1355
  %v3165 = vpop.f32.mrb[0].mxu0
  %v3166 = vadd.f32 %v3125, %v3165
  %v3167 = vpop.f32.mrb[0].mxu0
  %v3168 = vadd.f32 %v3127, %v3167
  %v3169 = vpop.f32.mrb[0].mxu0
  %v3170 = vpop.f32.mrb[0].mxu0
  %3171 = vdwg.mxu0
  %v3172 = vtanh.pop %v2920
  %v3173 = vtanh.pop %v2922
  %v3174 = vtanh.pop %v3043
  %v3175 = vtanh.pop %v3045
  %v3176 = vtanh.pop %v3166
  %v3177 = vtanh.pop %v3168
  %v3178 = vpack.c.bf16 %v3172, %v3172
  %v3179 = vpack.c.bf16 %v3173, %v3173
  %v3180 = vpack.c.bf16 %v3174, %v3174
  %v3181 = vpack.c.bf16 %v3175, %v3175
  %v3182 = vpack.c.bf16 %v3176, %v3176
  %v3183 = vpack.c.bf16 %v3177, %v3177
  %v3184 = vld [vmem:[%s3] sm:$0xf]
  %v3185 = vld [vmem:[%s3 + $0x4] sm:$0xf]
  %v3186 = vld [vmem:[%s3 + $0x8] sm:$0xf]
  %v3187 = vld [vmem:[%s3 + $0xc] sm:$0xf]
  %v3188 = vld [vmem:[%s3 + $0x10] sm:$0xf]
  %v3189 = vld [vmem:[%s3 + $0x14] sm:$0xf]
  %v3190 = vld [vmem:[%s3 + $0x18] sm:$0xf]
  %v3191 = vld [vmem:[%s3 + $0x1c] sm:$0xf]
  %v3192 = vld [vmem:[%s3 + $0x20] sm:$0xf]
  %v3193 = vld [vmem:[%s3 + $0x24] sm:$0xf]
  %v3194 = vld [vmem:[%s3 + $0x28] sm:$0xf]
  %v3195 = vld [vmem:[%s3 + $0x2c] sm:$0xf]
  %v3196 = vld [vmem:[%s3 + $0x30] sm:$0xf]
  %v3197 = vld [vmem:[%s3 + $0x34] sm:$0xf]
  %v3198 = vld [vmem:[%s3 + $0x38] sm:$0xf]
  %v3199 = vld [vmem:[%s3 + $0x3c] sm:$0xf]
  %v3200 = vld [vmem:[%s3 + $0x40] sm:$0xf]
  %v3201 = vld [vmem:[%s3 + $0x44] sm:$0xf]
  %v3202 = vld [vmem:[%s3 + $0x48] sm:$0xf]
  %v3203 = vld [vmem:[%s3 + $0x4c] sm:$0xf]
  %v3204 = vld [vmem:[%s3 + $0x50] sm:$0xf]
  %v3205 = vld [vmem:[%s3 + $0x54] sm:$0xf]
  %v3206 = vld [vmem:[%s3 + $0x58] sm:$0xf]
  %v3207 = vld [vmem:[%s3 + $0x5c] sm:$0xf]
  %v3208 = vld [vmem:[%s3 + $0x60] sm:$0xf]
  %v3209 = vld [vmem:[%s3 + $0x64] sm:$0xf]
  %v3210 = vld [vmem:[%s3 + $0x68] sm:$0xf]
  %v3211 = vld [vmem:[%s3 + $0x6c] sm:$0xf]
  %v3212 = vld [vmem:[%s3 + $0x70] sm:$0xf]
  %v3213 = vld [vmem:[%s3 + $0x74] sm:$0xf]
  %v3214 = vld [vmem:[%s3 + $0x78] sm:$0xf]
  %v3215 = vld [vmem:[%s3 + $0x7c] sm:$0xf]
  %v3216 = vld [vmem:[%s3 + $0x80] sm:$0xf]
  %v3217 = vld [vmem:[%s3 + $0x84] sm:$0xf]
  %v3218 = vld [vmem:[%s3 + $0x88] sm:$0xf]
  %v3219 = vld [vmem:[%s3 + $0x8c] sm:$0xf]
  %v3220 = vld [vmem:[%s3 + $0x90] sm:$0xf]
  %v3221 = vld [vmem:[%s3 + $0x94] sm:$0xf]
  %v3222 = vld [vmem:[%s3 + $0x98] sm:$0xf]
  %v3223 = vld [vmem:[%s3 + $0x9c] sm:$0xf]
  %v3224 = vld [vmem:[%s3 + $0xa0] sm:$0xf]
  %v3225 = vld [vmem:[%s3 + $0xa4] sm:$0xf]
  %v3226 = vld [vmem:[%s3 + $0xa8] sm:$0xf]
  %v3227 = vld [vmem:[%s3 + $0xac] sm:$0xf]
  %v3228 = vld [vmem:[%s3 + $0xb0] sm:$0xf]
  %v3229 = vld [vmem:[%s3 + $0xb4] sm:$0xf]
  %v3230 = vld [vmem:[%s3 + $0xb8] sm:$0xf]
  %v3231 = vld [vmem:[%s3 + $0xbc] sm:$0xf]
  %v3232 = vld [vmem:[%s3 + $0xc0] sm:$0xf]
  %v3233 = vld [vmem:[%s3 + $0xc4] sm:$0xf]
  %v3234 = vld [vmem:[%s3 + $0xc8] sm:$0xf]
  %v3235 = vld [vmem:[%s3 + $0xcc] sm:$0xf]
  %v3236 = vld [vmem:[%s3 + $0xd0] sm:$0xf]
  %v3237 = vld [vmem:[%s3 + $0xd4] sm:$0xf]
  %v3238 = vld [vmem:[%s3 + $0xd8] sm:$0xf]
  %v3239 = vld [vmem:[%s3 + $0xdc] sm:$0xf]
  %v3240 = vld [vmem:[%s3 + $0xe0] sm:$0xf]
  %v3241 = vld [vmem:[%s3 + $0xe4] sm:$0xf]
  %v3242 = vld [vmem:[%s3 + $0xe8] sm:$0xf]
  %v3243 = vld [vmem:[%s3 + $0xec] sm:$0xf]
  %v3244 = vld [vmem:[%s3 + $0xf0] sm:$0xf]
  %v3245 = vld [vmem:[%s3 + $0xf4] sm:$0xf]
  %v3246 = vld [vmem:[%s3 + $0xf8] sm:$0xf]
  %v3247 = vld [vmem:[%s3 + $0xfc] sm:$0xf]
  %v3248 = vld [vmem:[%s3 + $0x100] sm:$0xf]
  %v3249 = vld [vmem:[%s3 + $0x104] sm:$0xf]
  %v3250 = vld [vmem:[%s3 + $0x108] sm:$0xf]
  %v3251 = vld [vmem:[%s3 + $0x10c] sm:$0xf]
  %v3252 = vld [vmem:[%s3 + $0x110] sm:$0xf]
  %v3253 = vld [vmem:[%s3 + $0x114] sm:$0xf]
  %v3254 = vld [vmem:[%s3 + $0x118] sm:$0xf]
  %v3255 = vld [vmem:[%s3 + $0x11c] sm:$0xf]
  %v3256 = vld [vmem:[%s3 + $0x120] sm:$0xf]
  %v3257 = vld [vmem:[%s3 + $0x124] sm:$0xf]
  %v3258 = vld [vmem:[%s3 + $0x128] sm:$0xf]
  %v3259 = vld [vmem:[%s3 + $0x12c] sm:$0xf]
  %v3260 = vld [vmem:[%s3 + $0x130] sm:$0xf]
  %v3261 = vld [vmem:[%s3 + $0x134] sm:$0xf]
  %v3262 = vld [vmem:[%s3 + $0x138] sm:$0xf]
  %v3263 = vld [vmem:[%s3 + $0x13c] sm:$0xf]
  %v3264 = vld [vmem:[%s3 + $0x140] sm:$0xf]
  %v3265 = vld [vmem:[%s3 + $0x144] sm:$0xf]
  %v3266 = vld [vmem:[%s3 + $0x148] sm:$0xf]
  %v3267 = vld [vmem:[%s3 + $0x14c] sm:$0xf]
  %v3268 = vld [vmem:[%s3 + $0x150] sm:$0xf]
  %v3269 = vld [vmem:[%s3 + $0x154] sm:$0xf]
  %v3270 = vld [vmem:[%s3 + $0x158] sm:$0xf]
  %v3271 = vld [vmem:[%s3 + $0x15c] sm:$0xf]
  %v3272 = vld [vmem:[%s3 + $0x160] sm:$0xf]
  %v3273 = vld [vmem:[%s3 + $0x164] sm:$0xf]
  %v3274 = vld [vmem:[%s3 + $0x168] sm:$0xf]
  %v3275 = vld [vmem:[%s3 + $0x16c] sm:$0xf]
  %v3276 = vld [vmem:[%s3 + $0x170] sm:$0xf]
  %v3277 = vld [vmem:[%s3 + $0x174] sm:$0xf]
  %v3278 = vld [vmem:[%s3 + $0x178] sm:$0xf]
  %v3279 = vld [vmem:[%s3 + $0x17c] sm:$0xf]
  %v3280 = vld [vmem:[%s4] sm:$0x1]
  %v3282 = vlaneseq
  %v3283 = vshrl.u32 %v3282, 7
  %v3284 = vsub.s32 0, %v3283
  %v3285 = vrot.slane %v3280, %v3284
  %v3383 = vunpack.c.l.b16 %v3184
  %v3384 = vunpack.c.l.b16 %v3185
  %v3385 = vunpack.c.l.b16 %v3186
  %v3386 = vunpack.c.l.b16 %v3187
  %v3387 = vunpack.c.l.b16 %v3188
  %v3388 = vunpack.c.l.b16 %v3189
  %v3389 = vunpack.c.l.b16 %v3190
  %v3390 = vunpack.c.l.b16 %v3191
  %v3391 = vunpack.c.l.b16 %v3192
  %v3392 = vunpack.c.l.b16 %v3193
  %v3393 = vunpack.c.l.b16 %v3194
  %v3394 = vunpack.c.l.b16 %v3195
  %v3395 = vunpack.c.l.b16 %v3196
  %v3396 = vunpack.c.l.b16 %v3197
  %v3397 = vunpack.c.l.b16 %v3198
  %v3398 = vunpack.c.l.b16 %v3199
  %v3399 = vunpack.c.l.b16 %v3200
  %v3400 = vunpack.c.l.b16 %v3201
  %v3401 = vunpack.c.l.b16 %v3202
  %v3402 = vunpack.c.l.b16 %v3203
  %v3403 = vunpack.c.l.b16 %v3204
  %v3404 = vunpack.c.l.b16 %v3205
  %v3405 = vunpack.c.l.b16 %v3206
  %v3406 = vunpack.c.l.b16 %v3207
  %v3407 = vunpack.c.l.b16 %v3208
  %v3408 = vunpack.c.l.b16 %v3209
  %v3409 = vunpack.c.l.b16 %v3210
  %v3410 = vunpack.c.l.b16 %v3211
  %v3411 = vunpack.c.l.b16 %v3212
  %v3412 = vunpack.c.l.b16 %v3213
  %v3413 = vunpack.c.l.b16 %v3214
  %v3414 = vunpack.c.l.b16 %v3215
  %v3415 = vunpack.c.l.b16 %v3216
  %v3416 = vunpack.c.l.b16 %v3217
  %v3417 = vunpack.c.l.b16 %v3218
  %v3418 = vunpack.c.l.b16 %v3219
  %v3419 = vunpack.c.l.b16 %v3220
  %v3420 = vunpack.c.l.b16 %v3221
  %v3421 = vunpack.c.l.b16 %v3222
  %v3422 = vunpack.c.l.b16 %v3223
  %v3423 = vunpack.c.l.b16 %v3224
  %v3424 = vunpack.c.l.b16 %v3225
  %v3425 = vunpack.c.l.b16 %v3226
  %v3426 = vunpack.c.l.b16 %v3227
  %v3427 = vunpack.c.l.b16 %v3228
  %v3428 = vunpack.c.l.b16 %v3229
  %v3429 = vunpack.c.l.b16 %v3230
  %v3430 = vunpack.c.l.b16 %v3231
  %v3431 = vunpack.c.l.b16 %v3232
  %v3432 = vunpack.c.l.b16 %v3233
  %v3433 = vunpack.c.l.b16 %v3234
  %v3434 = vunpack.c.l.b16 %v3235
  %v3435 = vunpack.c.l.b16 %v3236
  %v3436 = vunpack.c.l.b16 %v3237
  %v3437 = vunpack.c.l.b16 %v3238
  %v3438 = vunpack.c.l.b16 %v3239
  %v3439 = vunpack.c.l.b16 %v3240
  %v3440 = vunpack.c.l.b16 %v3241
  %v3441 = vunpack.c.l.b16 %v3242
  %v3442 = vunpack.c.l.b16 %v3243
  %v3443 = vunpack.c.l.b16 %v3244
  %v3444 = vunpack.c.l.b16 %v3245
  %v3445 = vunpack.c.l.b16 %v3246
  %v3446 = vunpack.c.l.b16 %v3247
  %v3447 = vunpack.c.l.b16 %v3248
  %v3448 = vunpack.c.l.b16 %v3249
  %v3449 = vunpack.c.l.b16 %v3250
  %v3450 = vunpack.c.l.b16 %v3251
  %v3451 = vunpack.c.l.b16 %v3252
  %v3452 = vunpack.c.l.b16 %v3253
  %v3453 = vunpack.c.l.b16 %v3254
  %v3454 = vunpack.c.l.b16 %v3255
  %v3455 = vunpack.c.l.b16 %v3256
  %v3456 = vunpack.c.l.b16 %v3257
  %v3457 = vunpack.c.l.b16 %v3258
  %v3458 = vunpack.c.l.b16 %v3259
  %v3459 = vunpack.c.l.b16 %v3260
  %v3460 = vunpack.c.l.b16 %v3261
  %v3461 = vunpack.c.l.b16 %v3262
  %v3462 = vunpack.c.l.b16 %v3263
  %v3463 = vunpack.c.l.b16 %v3264
  %v3464 = vunpack.c.l.b16 %v3265
  %v3465 = vunpack.c.l.b16 %v3266
  %v3466 = vunpack.c.l.b16 %v3267
  %v3467 = vunpack.c.l.b16 %v3268
  %v3468 = vunpack.c.l.b16 %v3269
  %v3469 = vunpack.c.l.b16 %v3270
  %v3470 = vunpack.c.l.b16 %v3271
  %v3471 = vunpack.c.l.b16 %v3272
  %v3472 = vunpack.c.l.b16 %v3273
  %v3473 = vunpack.c.l.b16 %v3274
  %v3474 = vunpack.c.l.b16 %v3275
  %v3475 = vunpack.c.l.b16 %v3276
  %v3476 = vunpack.c.l.b16 %v3277
  %v3477 = vunpack.c.l.b16 %v3278
  %v3478 = vunpack.c.l.b16 %v3279
  %v3479 = vpack.c.b16 %v3384, %v3383
  %v3480 = vpack.c.b16 %v3386, %v3385
  %v3481 = vpack.c.b16 %v3388, %v3387
  %v3482 = vpack.c.b16 %v3390, %v3389
  %v3483 = vpack.c.b16 %v3392, %v3391
  %v3484 = vpack.c.b16 %v3394, %v3393
  %v3485 = vpack.c.b16 %v3396, %v3395
  %v3486 = vpack.c.b16 %v3398, %v3397
  %v3487 = vpack.c.b16 %v3400, %v3399
  %v3488 = vpack.c.b16 %v3402, %v3401
  %v3489 = vpack.c.b16 %v3404, %v3403
  %v3490 = vpack.c.b16 %v3406, %v3405
  %v3491 = vpack.c.b16 %v3408, %v3407
  %v3492 = vpack.c.b16 %v3410, %v3409
  %v3493 = vpack.c.b16 %v3412, %v3411
  %v3494 = vpack.c.b16 %v3414, %v3413
  %v3495 = vpack.c.b16 %v3416, %v3415
  %v3496 = vpack.c.b16 %v3418, %v3417
  %v3497 = vpack.c.b16 %v3420, %v3419
  %v3498 = vpack.c.b16 %v3422, %v3421
  %v3499 = vpack.c.b16 %v3424, %v3423
  %v3500 = vpack.c.b16 %v3426, %v3425
  %v3501 = vpack.c.b16 %v3428, %v3427
  %v3502 = vpack.c.b16 %v3430, %v3429
  %v3503 = vpack.c.b16 %v3432, %v3431
  %v3504 = vpack.c.b16 %v3434, %v3433
  %v3505 = vpack.c.b16 %v3436, %v3435
  %v3506 = vpack.c.b16 %v3438, %v3437
  %v3507 = vpack.c.b16 %v3440, %v3439
  %v3508 = vpack.c.b16 %v3442, %v3441
  %v3509 = vpack.c.b16 %v3444, %v3443
  %v3510 = vpack.c.b16 %v3446, %v3445
  %v3511 = vpack.c.b16 %v3448, %v3447
  %v3512 = vpack.c.b16 %v3450, %v3449
  %v3513 = vpack.c.b16 %v3452, %v3451
  %v3514 = vpack.c.b16 %v3454, %v3453
  %v3515 = vpack.c.b16 %v3456, %v3455
  %v3516 = vpack.c.b16 %v3458, %v3457
  %v3517 = vpack.c.b16 %v3460, %v3459
  %v3518 = vpack.c.b16 %v3462, %v3461
  %v3519 = vpack.c.b16 %v3464, %v3463
  %v3520 = vpack.c.b16 %v3466, %v3465
  %v3521 = vpack.c.b16 %v3468, %v3467
  %v3522 = vpack.c.b16 %v3470, %v3469
  %v3523 = vpack.c.b16 %v3472, %v3471
  %v3524 = vpack.c.b16 %v3474, %v3473
  %v3525 = vpack.c.b16 %v3476, %v3475
  %v3526 = vpack.c.b16 %v3478, %v3477
  %3575 = vmatprep.subr.bf16.mxu0 0
  %3576 = vmatpush1.bf16.msra.mxu0 %v3479
  %3577 = vmatprep.subr.bf16.mxu0 0
  %3578 = vmatpush1.bf16.msra.mxu0 %v3480
  %3579 = vmatprep.subr.bf16.mxu0 0
  %3580 = vmatpush1.bf16.msra.mxu0 %v3481
  %3581 = vmatprep.subr.bf16.mxu0 0
  %3582 = vmatpush1.bf16.msra.mxu0 %v3482
  %3583 = vmatprep.subr.bf16.mxu0 0
  %3584 = vmatpush1.bf16.msra.mxu0 %v3483
  %3585 = vmatprep.subr.bf16.mxu0 0
  %3586 = vmatpush1.bf16.msra.mxu0 %v3484
  %3587 = vmatprep.subr.bf16.mxu0 0
  %3588 = vmatpush1.bf16.msra.mxu0 %v3485
  %3589 = vmatprep.subr.bf16.mxu0 0
  %3590 = vmatpush1.bf16.msra.mxu0 %v3486
  %3591 = vmatprep.subr.bf16.mxu0 0
  %3592 = vmatpush1.bf16.msra.mxu0 %v3487
  %3593 = vmatprep.subr.bf16.mxu0 0
  %3594 = vmatpush1.bf16.msra.mxu0 %v3488
  %3595 = vmatprep.subr.bf16.mxu0 0
  %3596 = vmatpush1.bf16.msra.mxu0 %v3489
  %3597 = vmatprep.subr.bf16.mxu0 0
  %3598 = vmatpush1.bf16.msra.mxu0 %v3490
  %3599 = vmatprep.subr.bf16.mxu0 0
  %3600 = vmatpush1.bf16.msra.mxu0 %v3491
  %3601 = vmatprep.subr.bf16.mxu0 0
  %3602 = vmatpush1.bf16.msra.mxu0 %v3492
  %3603 = vmatprep.subr.bf16.mxu0 0
  %3604 = vmatpush1.bf16.msra.mxu0 %v3493
  %3605 = vmatprep.subr.bf16.mxu0 0
  %3606 = vmatpush1.bf16.msra.mxu0 %v3494
  %3607 = vmatprep.mubr.bf16.mxu0 %v3179
  %3608 = vmatmul.mubr.bf16.gmra.mrb[0].mxu0 %v3178
  %v3609 = vpop.f32.mrb[0].mxu0
  %v3610 = vadd.f32 %v3285, %v3609
  %v3611 = vpop.f32.mrb[0].mxu0
  %v3612 = vpop.f32.mrb[0].mxu0
  %v3613 = vpop.f32.mrb[0].mxu0
  %3614 = vdwg.mxu0
  %3615 = vmatprep.subr.bf16.mxu0 0
  %3616 = vmatpush1.bf16.msra.mxu0 %v3495
  %3617 = vmatprep.subr.bf16.mxu0 0
  %3618 = vmatpush1.bf16.msra.mxu0 %v3496
  %3619 = vmatprep.subr.bf16.mxu0 0
  %3620 = vmatpush1.bf16.msra.mxu0 %v3497
  %3621 = vmatprep.subr.bf16.mxu0 0
  %3622 = vmatpush1.bf16.msra.mxu0 %v3498
  %3623 = vmatprep.subr.bf16.mxu0 0
  %3624 = vmatpush1.bf16.msra.mxu0 %v3499
  %3625 = vmatprep.subr.bf16.mxu0 0
  %3626 = vmatpush1.bf16.msra.mxu0 %v3500
  %3627 = vmatprep.subr.bf16.mxu0 0
  %3628 = vmatpush1.bf16.msra.mxu0 %v3501
  %3629 = vmatprep.subr.bf16.mxu0 0
  %3630 = vmatpush1.bf16.msra.mxu0 %v3502
  %3631 = vmatprep.subr.bf16.mxu0 0
  %3632 = vmatpush1.bf16.msra.mxu0 %v3503
  %3633 = vmatprep.subr.bf16.mxu0 0
  %3634 = vmatpush1.bf16.msra.mxu0 %v3504
  %3635 = vmatprep.subr.bf16.mxu0 0
  %3636 = vmatpush1.bf16.msra.mxu0 %v3505
  %3637 = vmatprep.subr.bf16.mxu0 0
  %3638 = vmatpush1.bf16.msra.mxu0 %v3506
  %3639 = vmatprep.subr.bf16.mxu0 0
  %3640 = vmatpush1.bf16.msra.mxu0 %v3507
  %3641 = vmatprep.subr.bf16.mxu0 0
  %3642 = vmatpush1.bf16.msra.mxu0 %v3508
  %3643 = vmatprep.subr.bf16.mxu0 0
  %3644 = vmatpush1.bf16.msra.mxu0 %v3509
  %3645 = vmatprep.subr.bf16.mxu0 0
  %3646 = vmatpush1.bf16.msra.mxu0 %v3510
  %3647 = vmatprep.mubr.bf16.mxu0 %v3181
  %3648 = vmatmul.mubr.bf16.gmra.mrb[0].mxu0 %v3180
  %v3649 = vpop.f32.mrb[0].mxu0
  %v3650 = vadd.f32 %v3610, %v3649
  %v3651 = vpop.f32.mrb[0].mxu0
  %v3652 = vpop.f32.mrb[0].mxu0
  %v3653 = vpop.f32.mrb[0].mxu0
  %3654 = vdwg.mxu0
  %3655 = vmatprep.subr.bf16.mxu0 0
  %3656 = vmatpush1.bf16.msra.mxu0 %v3511
  %3657 = vmatprep.subr.bf16.mxu0 0
  %3658 = vmatpush1.bf16.msra.mxu0 %v3512
  %3659 = vmatprep.subr.bf16.mxu0 0
  %3660 = vmatpush1.bf16.msra.mxu0 %v3513
  %3661 = vmatprep.subr.bf16.mxu0 0
  %3662 = vmatpush1.bf16.msra.mxu0 %v3514
  %3663 = vmatprep.subr.bf16.mxu0 0
  %3664 = vmatpush1.bf16.msra.mxu0 %v3515
  %3665 = vmatprep.subr.bf16.mxu0 0
  %3666 = vmatpush1.bf16.msra.mxu0 %v3516
  %3667 = vmatprep.subr.bf16.mxu0 0
  %3668 = vmatpush1.bf16.msra.mxu0 %v3517
  %3669 = vmatprep.subr.bf16.mxu0 0
  %3670 = vmatpush1.bf16.msra.mxu0 %v3518
  %3671 = vmatprep.subr.bf16.mxu0 0
  %3672 = vmatpush1.bf16.msra.mxu0 %v3519
  %3673 = vmatprep.subr.bf16.mxu0 0
  %3674 = vmatpush1.bf16.msra.mxu0 %v3520
  %3675 = vmatprep.subr.bf16.mxu0 0
  %3676 = vmatpush1.bf16.msra.mxu0 %v3521
  %3677 = vmatprep.subr.bf16.mxu0 0
  %3678 = vmatpush1.bf16.msra.mxu0 %v3522
  %3679 = vmatprep.subr.bf16.mxu0 0
  %3680 = vmatpush1.bf16.msra.mxu0 %v3523
  %3681 = vmatprep.subr.bf16.mxu0 0
  %3682 = vmatpush1.bf16.msra.mxu0 %v3524
  %3683 = vmatprep.subr.bf16.mxu0 0
  %3684 = vmatpush1.bf16.msra.mxu0 %v3525
  %3685 = vmatprep.subr.bf16.mxu0 0
  %3686 = vmatpush1.bf16.msra.mxu0 %v3526
  %3687 = vmatprep.mubr.bf16.mxu0 %v3183
  %3688 = vmatmul.mubr.bf16.gmra.mrb[0].mxu0 %v3182
  %v3689 = vpop.f32.mrb[0].mxu0
  %v3690 = vadd.f32 %v3650, %v3689
  %v3691 = vpop.f32.mrb[0].mxu0
  %v3692 = vpop.f32.mrb[0].mxu0
  %v3693 = vpop.f32.mrb[0].mxu0
  %3694 = vdwg.mxu0
  %3695 = vst [vmem:[%s5] sm:$0xff] %v3690
  // Predicated region
  $region22: #{text_classification_forward.1} parent=0 // pred_check
    _
  $region23: #{text_classification_forward.1} parent=0 // pred_check_branch
    %3697 = sbr.rel (0) target = $region25
  $region24: #{text_classification_forward.1} parent=0 // pred_region
    _
  $region25: #{text_classification_forward.1} parent=0 // pred_fallthru
    _
  // Predicated region
  $region26: #{text_classification_forward.1} parent=0 // pred_check
    _
  $region27: #{text_classification_forward.1} parent=0 // pred_check_branch
    %3699 = sbr.rel (0) target = $region29
  $region28: #{text_classification_forward.1} parent=0 // pred_region
    _
  $region29: #{text_classification_forward.1} parent=0 // pred_fallthru
    _

</llo_original>
